<compile_context>
chip_gen: v5e
topology: v5e:2x2
jax: 0.10.0
libtpu: 0.0.40
codegen_flags: <defaults>
</compile_context>

<pallas_src>
import functools

import jax
import jax.numpy as jnp
from jax.experimental import pallas as pl
from jax.experimental.pallas import tpu as pltpu


# ---------------------------------------------------------------------------
# Fused kernel: LN + GELU + input projection (both dirs) + bidirectional GRU
# Row layout is time-major: row index = t * B + b.
# ---------------------------------------------------------------------------
def _bigru_fused_kernel(x_ref, gamma_ref, beta_ref, w6_ref, bx6_ref,
                        whh_f_ref, whh_b_ref, bh_f_ref, bh_b_ref,
                        out_ref, gx_ref, *, T, B, H):
    H2, H3 = 2 * H, 3 * H

    # ---- LayerNorm + exact-erf GELU over all (T*B) rows ----
    x = x_ref[...].astype(jnp.float32)                       # (T*B, D)
    mean = jnp.mean(x, axis=-1, keepdims=True)
    var = jnp.mean(jnp.square(x - mean), axis=-1, keepdims=True)
    y = (x - mean) * jax.lax.rsqrt(var + 1e-5)
    y = y * gamma_ref[...] + beta_ref[...]
    y = 0.5 * y * (1.0 + jax.lax.erf(y * jnp.float32(0.7071067811865476)))

    # ---- Hoisted input projection for BOTH directions: one batched matmul ---
    # w6 = [W_ih_f^T | W_ih_b^T] : (D, 6H); bx6 already holds b_ih + b_hh(r,z).
    gx_ref[...] = (
        jnp.dot(y, w6_ref[...], preferred_element_type=jnp.float32)
        + bx6_ref[...]
    )

    whh_f = whh_f_ref[...]                                   # (H, 3H)
    whh_b = whh_b_ref[...]
    bh_f = bh_f_ref[...]                                     # (1, 3H), zeros in r/z
    bh_b = bh_b_ref[...]

    def gru_step(gx_t, h, whh, bh):
        # PyTorch gate order [r, z, n]; b_hn stays inside the r * (.) term.
        gh = jnp.dot(h, whh, preferred_element_type=jnp.float32) + bh
        r = jax.nn.sigmoid(gx_t[:, 0:H] + gh[:, 0:H])
        z = jax.nn.sigmoid(gx_t[:, H:H2] + gh[:, H:H2])
        n = jnp.tanh(gx_t[:, H2:H3] + r * gh[:, H2:H3])
        return (1.0 - z) * n + z * h

    h_f = jnp.zeros((B, H), jnp.float32)
    h_b = jnp.zeros((B, H), jnp.float32)

    # Statically unrolled time loop (T is small & static).  Forward reads rows
    # [t*B, (t+1)*B); backward runs on the time-reversed sequence in the same
    # iteration and writes to the mirrored rows, lanes [H:2H).
    # TODO(synk): for large T switch to a chunked grid axis / lax.fori_loop.
    for t in range(T):
        tb = T - 1 - t
        h_f = gru_step(gx_ref[t * B:(t + 1) * B, 0:H3], h_f, whh_f, bh_f)
        h_b = gru_step(gx_ref[tb * B:(tb + 1) * B, H3:2 * H3], h_b, whh_b, bh_b)
        out_ref[t * B:(t + 1) * B, 0:H] = h_f.astype(out_ref.dtype)
        out_ref[tb * B:(tb + 1) * B, H:H2] = h_b.astype(out_ref.dtype)


# ---------------------------------------------------------------------------
# Module forward
# ---------------------------------------------------------------------------
def bigru_forward(x, params):
    B, T, D = x.shape
    H = params["w_hh_f"].shape[1]
    H3, H6 = 3 * H, 6 * H

    # --- weight prep (tiny, done in XLA; in a real model precomputed once) ---
    w6 = jnp.concatenate(
        [jnp.transpose(params["w_ih_f"]), jnp.transpose(params["w_ih_b"])],
        axis=1)                                              # (D, 6H)

    def fold_bias(b_ih, b_hh):
        # bx: goes into the hoisted projection (b_ih + r/z part of b_hh)
        # bh: only the n-gate b_hh stays in the recurrent add
        bx = b_ih + jnp.concatenate([b_hh[:2 * H], jnp.zeros((H,), b_hh.dtype)])
        bh = jnp.concatenate([jnp.zeros((2 * H,), b_hh.dtype), b_hh[2 * H:]])
        return bx, bh

    bx_f, bh_f = fold_bias(params["b_ih_f"], params["b_hh_f"])
    bx_b, bh_b = fold_bias(params["b_ih_b"], params["b_hh_b"])
    bx6 = jnp.concatenate([bx_f, bx_b]).reshape(1, H6)

    whh_f = jnp.transpose(params["w_hh_f"])                  # (H, 3H)
    whh_b = jnp.transpose(params["w_hh_b"])

    # Time-major rows so the kernel uses static row slices per timestep.
    x_tb = jnp.transpose(x, (1, 0, 2)).reshape(T * B, D)

    kernel = functools.partial(_bigru_fused_kernel, T=T, B=B, H=H)

    out_tb = pl.pallas_call(
        kernel,
        out_shape=jax.ShapeDtypeStruct((T * B, 2 * H), x.dtype),
        grid_spec=pltpu.PrefetchScalarGridSpec(
            num_scalar_prefetch=0,
            grid=(1,),
            in_specs=[
                pl.BlockSpec((T * B, D), lambda i: (0, 0)),   # x (time-major rows)
                pl.BlockSpec((1, D), lambda i: (0, 0)),       # ln gamma
                pl.BlockSpec((1, D), lambda i: (0, 0)),       # ln beta
                pl.BlockSpec((D, H6), lambda i: (0, 0)),      # W_ih both dirs
                pl.BlockSpec((1, H6), lambda i: (0, 0)),      # folded input bias
                pl.BlockSpec((H, H3), lambda i: (0, 0)),      # W_hh fwd
                pl.BlockSpec((H, H3), lambda i: (0, 0)),      # W_hh bwd
                pl.BlockSpec((1, H3), lambda i: (0, 0)),      # b_hh(n) fwd
                pl.BlockSpec((1, H3), lambda i: (0, 0)),      # b_hh(n) bwd
            ],
            out_specs=pl.BlockSpec((T * B, 2 * H), lambda i: (0, 0)),
            scratch_shapes=[pltpu.VMEM((T * B, H6), jnp.float32)],
        ),
        compiler_params=pltpu.CompilerParams(
            dimension_semantics=("arbitrary",)),
    )(x_tb, params["ln_gamma"].reshape(1, D), params["ln_beta"].reshape(1, D),
      w6, bx6, whh_f, whh_b, bh_f.reshape(1, H3), bh_b.reshape(1, H3))

    out = jnp.transpose(out_tb.reshape(T, B, 2 * H), (1, 0, 2))   # (B, T, 2H)
    # TODO(synk): nn.Dropout implemented as inference-mode identity
    # (training-mode stochastic mask would use pltpu.prng_seed/prng_random_bits).
    return out


# ---------------------------------------------------------------------------
# Pure-JAX reference (correctness check)
# ---------------------------------------------------------------------------
def ref_forward(x, params):
    gamma, beta = params["ln_gamma"], params["ln_beta"]
    mean = jnp.mean(x, axis=-1, keepdims=True)
    var = jnp.mean(jnp.square(x - mean), axis=-1, keepdims=True)
    y = (x - mean) / jnp.sqrt(var + 1e-5) * gamma + beta
    y = 0.5 * y * (1.0 + jax.lax.erf(y / jnp.sqrt(2.0)))

    def run_dir(xs, w_ih, w_hh, b_ih, b_hh):
        H = w_hh.shape[1]

        def step(h, x_t):
            gx = x_t @ w_ih.T + b_ih
            gh = h @ w_hh.T + b_hh
            r = jax.nn.sigmoid(gx[:, :H] + gh[:, :H])
            z = jax.nn.sigmoid(gx[:, H:2 * H] + gh[:, H:2 * H])
            n = jnp.tanh(gx[:, 2 * H:] + r * gh[:, 2 * H:])
            h_new = (1.0 - z) * n + z * h
            return h_new, h_new

        h0 = jnp.zeros((xs.shape[1], H), xs.dtype)
        _, outs = jax.lax.scan(step, h0, xs)
        return outs

    y_tbd = jnp.transpose(y, (1, 0, 2))
    of = run_dir(y_tbd, params["w_ih_f"], params["w_hh_f"],
                 params["b_ih_f"], params["b_hh_f"])
    ob = run_dir(y_tbd[::-1], params["w_ih_b"], params["w_hh_b"],
                 params["b_ih_b"], params["b_hh_b"])[::-1]
    out = jnp.concatenate([of, ob], axis=-1)
    return jnp.transpose(out, (1, 0, 2))


if __name__ == "__main__":
    B, T = 2, 8
    rnn_dim, hidden = 32, 32     # GRU input size D and hidden size H

    key = jax.random.PRNGKey(0)
    keys = jax.random.split(key, 12)
    k = 1.0 / jnp.sqrt(hidden)

    params = {
        "ln_gamma": 1.0 + 0.1 * jax.random.normal(keys[0], (rnn_dim,), jnp.float32),
        "ln_beta": 0.1 * jax.random.normal(keys[1], (rnn_dim,), jnp.float32),
        # forward direction (PyTorch layout: weight_ih (3H, D), weight_hh (3H, H))
        "w_ih_f": jax.random.uniform(keys[2], (3 * hidden, rnn_dim), jnp.float32, -k, k),
        "w_hh_f": jax.random.uniform(keys[3], (3 * hidden, hidden), jnp.float32, -k, k),
        "b_ih_f": jax.random.uniform(keys[4], (3 * hidden,), jnp.float32, -k, k),
        "b_hh_f": jax.random.uniform(keys[5], (3 * hidden,), jnp.float32, -k, k),
        # reverse direction
        "w_ih_b": jax.random.uniform(keys[6], (3 * hidden, rnn_dim), jnp.float32, -k, k),
        "w_hh_b": jax.random.uniform(keys[7], (3 * hidden, hidden), jnp.float32, -k, k),
        "b_ih_b": jax.random.uniform(keys[8], (3 * hidden,), jnp.float32, -k, k),
        "b_hh_b": jax.random.uniform(keys[9], (3 * hidden,), jnp.float32, -k, k),
    }

    x = jax.random.normal(keys[10], (B, T, rnn_dim), jnp.float32)

    out = jax.block_until_ready(bigru_forward(x, params))
    ref = jax.block_until_ready(ref_forward(x, params))

    assert out.shape == (B, T, 2 * hidden), out.shape
    assert jnp.allclose(out, ref, atol=2e-3, rtol=2e-3), float(jnp.max(jnp.abs(out - ref)))
    print("KERNEL_OK")
</pallas_src>

<mosaic_0001>
module attributes {stable_mosaic.version = 11 : i64} {
  func.func @_bigru_fused_kernel(%arg0: i32, %arg1: memref<16x32xf32, #tpu.memory_space<vmem>>, %arg2: memref<1x32xf32, #tpu.memory_space<vmem>>, %arg3: memref<1x32xf32, #tpu.memory_space<vmem>>, %arg4: memref<32x192xf32, #tpu.memory_space<vmem>>, %arg5: memref<1x192xf32, #tpu.memory_space<vmem>>, %arg6: memref<32x96xf32, #tpu.memory_space<vmem>>, %arg7: memref<32x96xf32, #tpu.memory_space<vmem>>, %arg8: memref<1x96xf32, #tpu.memory_space<vmem>>, %arg9: memref<1x96xf32, #tpu.memory_space<vmem>>, %arg10: memref<16x64xf32, #tpu.memory_space<vmem>>, %arg11: memref<16x192xf32, #tpu.memory_space<vmem>>) attributes {dimension_semantics = [#tpu.dimension_semantics<arbitrary>], iteration_bounds = array<i64: 1>, scalar_prefetch = 0 : i64, scratch_operands = 1 : i64, tpu.core_type = #tpu.core_type<tc>, window_params = [{pipeline_mode = #tpu.pipeline_mode<synchronous>, transform_indices = @transform_0, window_bounds = array<i64: 16, 32>}, {pipeline_mode = #tpu.pipeline_mode<synchronous>, transform_indices = @transform_1, window_bounds = array<i64: 1, 32>}, {pipeline_mode = #tpu.pipeline_mode<synchronous>, transform_indices = @transform_2, window_bounds = array<i64: 1, 32>}, {pipeline_mode = #tpu.pipeline_mode<synchronous>, transform_indices = @transform_3, window_bounds = array<i64: 32, 192>}, {pipeline_mode = #tpu.pipeline_mode<synchronous>, transform_indices = @transform_4, window_bounds = array<i64: 1, 192>}, {pipeline_mode = #tpu.pipeline_mode<synchronous>, transform_indices = @transform_5, window_bounds = array<i64: 32, 96>}, {pipeline_mode = #tpu.pipeline_mode<synchronous>, transform_indices = @transform_6, window_bounds = array<i64: 32, 96>}, {pipeline_mode = #tpu.pipeline_mode<synchronous>, transform_indices = @transform_7, window_bounds = array<i64: 1, 96>}, {pipeline_mode = #tpu.pipeline_mode<synchronous>, transform_indices = @transform_8, window_bounds = array<i64: 1, 96>}, {pipeline_mode = #tpu.pipeline_mode<synchronous>, transform_indices = @transform_9, window_bounds = array<i64: 16, 64>}]} {
    %c0 = arith.constant 0 : index
    %c0_0 = arith.constant 0 : index
    %0 = vector.load %arg1[%c0, %c0_0] : memref<16x32xf32, #tpu.memory_space<vmem>>, vector<16x32xf32>
    %cst = arith.constant dense<0.000000e+00> : vector<16xf32>
    %1 = vector.multi_reduction <add>, %0, %cst [1] : vector<16x32xf32> to vector<16xf32>
    %2 = vector.shape_cast %1 : vector<16xf32> to vector<16x1xf32>
    %cst_1 = arith.constant 3.200000e+01 : f32
    %3 = vector.broadcast %cst_1 : f32 to vector<16x1xf32>
    %4 = arith.divf %2, %3 : vector<16x1xf32>
    %5 = vector.broadcast %4 : vector<16x1xf32> to vector<16x32xf32>
    %6 = arith.subf %0, %5 : vector<16x32xf32>
    %7 = arith.mulf %6, %6 : vector<16x32xf32>
    %cst_2 = arith.constant dense<0.000000e+00> : vector<16xf32>
    %8 = vector.multi_reduction <add>, %7, %cst_2 [1] : vector<16x32xf32> to vector<16xf32>
    %9 = vector.shape_cast %8 : vector<16xf32> to vector<16x1xf32>
    %cst_3 = arith.constant 3.200000e+01 : f32
    %10 = vector.broadcast %cst_3 : f32 to vector<16x1xf32>
    %11 = arith.divf %9, %10 : vector<16x1xf32>
    %12 = vector.broadcast %4 : vector<16x1xf32> to vector<16x32xf32>
    %13 = arith.subf %0, %12 : vector<16x32xf32>
    %cst_4 = arith.constant 9.99999974E-6 : f32
    %14 = vector.broadcast %cst_4 : f32 to vector<16x1xf32>
    %15 = arith.addf %11, %14 : vector<16x1xf32>
    %16 = math.rsqrt %15 : vector<16x1xf32>
    %17 = vector.broadcast %16 : vector<16x1xf32> to vector<16x32xf32>
    %18 = arith.mulf %13, %17 : vector<16x32xf32>
    %c0_5 = arith.constant 0 : index
    %c0_6 = arith.constant 0 : index
    %19 = vector.load %arg2[%c0_5, %c0_6] : memref<1x32xf32, #tpu.memory_space<vmem>>, vector<1x32xf32>
    %20 = vector.broadcast %19 : vector<1x32xf32> to vector<16x32xf32>
    %21 = arith.mulf %18, %20 : vector<16x32xf32>
    %c0_7 = arith.constant 0 : index
    %c0_8 = arith.constant 0 : index
    %22 = vector.load %arg3[%c0_7, %c0_8] : memref<1x32xf32, #tpu.memory_space<vmem>>, vector<1x32xf32>
    %23 = vector.broadcast %22 : vector<1x32xf32> to vector<16x32xf32>
    %24 = arith.addf %21, %23 : vector<16x32xf32>
    %cst_9 = arith.constant 5.000000e-01 : f32
    %25 = vector.broadcast %cst_9 : f32 to vector<16x32xf32>
    %26 = arith.mulf %25, %24 : vector<16x32xf32>
    %cst_10 = arith.constant 0.707106769 : f32
    %27 = vector.broadcast %cst_10 : f32 to vector<16x32xf32>
    %28 = arith.mulf %24, %27 : vector<16x32xf32>
    %29 = math.erf %28 : vector<16x32xf32>
    %cst_11 = arith.constant 1.000000e+00 : f32
    %30 = vector.broadcast %cst_11 : f32 to vector<16x32xf32>
    %31 = arith.addf %30, %29 : vector<16x32xf32>
    %32 = arith.mulf %26, %31 : vector<16x32xf32>
    %c0_12 = arith.constant 0 : index
    %c0_13 = arith.constant 0 : index
    %33 = vector.load %arg4[%c0_12, %c0_13] : memref<32x192xf32, #tpu.memory_space<vmem>>, vector<32x192xf32>
    %cst_14 = arith.constant dense<0.000000e+00> : vector<16x192xf32>
    %34 = tpu.matmul %32, %33, %cst_14 {dimension_numbers = #tpu.dot_dimension_numbers<[1], [0], [0], [1], [0, 0, 1, 1], [], []>} : vector<16x32xf32>, vector<32x192xf32>, vector<16x192xf32> -> vector<16x192xf32>
    %c0_15 = arith.constant 0 : index
    %c0_16 = arith.constant 0 : index
    %35 = vector.load %arg5[%c0_15, %c0_16] : memref<1x192xf32, #tpu.memory_space<vmem>>, vector<1x192xf32>
    %36 = vector.broadcast %35 : vector<1x192xf32> to vector<16x192xf32>
    %37 = arith.addf %34, %36 : vector<16x192xf32>
    %c0_17 = arith.constant 0 : index
    %c0_18 = arith.constant 0 : index
    %38 = vector.load %arg11[%c0_17, %c0_18] : memref<16x192xf32, #tpu.memory_space<vmem>>, vector<16x192xf32>
    tpu.vector_store %arg11[%c0_17, %c0_18], %37 {strides = array<i32>} : memref<16x192xf32, #tpu.memory_space<vmem>>, vector<16x192xf32>,
    %c0_19 = arith.constant 0 : index
    %c0_20 = arith.constant 0 : index
    %39 = vector.load %arg6[%c0_19, %c0_20] : memref<32x96xf32, #tpu.memory_space<vmem>>, vector<32x96xf32>
    %c0_21 = arith.constant 0 : index
    %c0_22 = arith.constant 0 : index
    %40 = vector.load %arg7[%c0_21, %c0_22] : memref<32x96xf32, #tpu.memory_space<vmem>>, vector<32x96xf32>
    %c0_23 = arith.constant 0 : index
    %c0_24 = arith.constant 0 : index
    %41 = vector.load %arg8[%c0_23, %c0_24] : memref<1x96xf32, #tpu.memory_space<vmem>>, vector<1x96xf32>
    %c0_25 = arith.constant 0 : index
    %c0_26 = arith.constant 0 : index
    %42 = vector.load %arg9[%c0_25, %c0_26] : memref<1x96xf32, #tpu.memory_space<vmem>>, vector<1x96xf32>
    %cst_27 = arith.constant 0.000000e+00 : f32
    %43 = vector.broadcast %cst_27 : f32 to vector<2x32xf32>
    %cst_28 = arith.constant 0.000000e+00 : f32
    %44 = vector.broadcast %cst_28 : f32 to vector<2x32xf32>
    %c0_29 = arith.constant 0 : index
    %c0_30 = arith.constant 0 : index
    %45 = vector.load %arg11[%c0_29, %c0_30] : memref<16x192xf32, #tpu.memory_space<vmem>>, vector<2x96xf32>
    %cst_31 = arith.constant dense<0.000000e+00> : vector<2x96xf32>
    %46 = tpu.matmul %43, %39, %cst_31 {dimension_numbers = #tpu.dot_dimension_numbers<[1], [0], [0], [1], [0, 0, 1, 1], [], []>} : vector<2x32xf32>, vector<32x96xf32>, vector<2x96xf32> -> vector<2x96xf32>
    %47 = vector.broadcast %41 : vector<1x96xf32> to vector<2x96xf32>
    %48 = arith.addf %46, %47 : vector<2x96xf32>
    %49 = vector.extract_strided_slice %45 {offsets = [0, 0], sizes = [2, 32], strides = [1, 1]} : vector<2x96xf32> to vector<2x32xf32>
    %50 = vector.extract_strided_slice %48 {offsets = [0, 0], sizes = [2, 32], strides = [1, 1]} : vector<2x96xf32> to vector<2x32xf32>
    %51 = arith.addf %49, %50 : vector<2x32xf32>
    %52 = arith.negf %51 : vector<2x32xf32>
    %53 = math.exp %52 : vector<2x32xf32>
    %cst_32 = arith.constant 1.000000e+00 : f32
    %54 = vector.broadcast %cst_32 : f32 to vector<2x32xf32>
    %55 = arith.addf %54, %53 : vector<2x32xf32>
    %56 = arith.divf %54, %55 : vector<2x32xf32>
    %57 = vector.extract_strided_slice %45 {offsets = [0, 32], sizes = [2, 32], strides = [1, 1]} : vector<2x96xf32> to vector<2x32xf32>
    %58 = vector.extract_strided_slice %48 {offsets = [0, 32], sizes = [2, 32], strides = [1, 1]} : vector<2x96xf32> to vector<2x32xf32>
    %59 = arith.addf %57, %58 : vector<2x32xf32>
    %60 = arith.negf %59 : vector<2x32xf32>
    %61 = math.exp %60 : vector<2x32xf32>
    %cst_33 = arith.constant 1.000000e+00 : f32
    %62 = vector.broadcast %cst_33 : f32 to vector<2x32xf32>
    %63 = arith.addf %62, %61 : vector<2x32xf32>
    %64 = arith.divf %62, %63 : vector<2x32xf32>
    %65 = vector.extract_strided_slice %45 {offsets = [0, 64], sizes = [2, 32], strides = [1, 1]} : vector<2x96xf32> to vector<2x32xf32>
    %66 = vector.extract_strided_slice %48 {offsets = [0, 64], sizes = [2, 32], strides = [1, 1]} : vector<2x96xf32> to vector<2x32xf32>
    %67 = arith.mulf %56, %66 : vector<2x32xf32>
    %68 = arith.addf %65, %67 : vector<2x32xf32>
    %69 = math.tanh %68 : vector<2x32xf32>
    %cst_34 = arith.constant 1.000000e+00 : f32
    %70 = vector.broadcast %cst_34 : f32 to vector<2x32xf32>
    %71 = arith.subf %70, %64 : vector<2x32xf32>
    %72 = arith.mulf %71, %69 : vector<2x32xf32>
    %73 = arith.mulf %64, %43 : vector<2x32xf32>
    %74 = arith.addf %72, %73 : vector<2x32xf32>
    %c14 = arith.constant 14 : index
    %c96 = arith.constant 96 : index
    %75 = vector.load %arg11[%c14, %c96] : memref<16x192xf32, #tpu.memory_space<vmem>>, vector<2x96xf32>
    %cst_35 = arith.constant dense<0.000000e+00> : vector<2x96xf32>
    %76 = tpu.matmul %44, %40, %cst_35 {dimension_numbers = #tpu.dot_dimension_numbers<[1], [0], [0], [1], [0, 0, 1, 1], [], []>} : vector<2x32xf32>, vector<32x96xf32>, vector<2x96xf32> -> vector<2x96xf32>
    %77 = vector.broadcast %42 : vector<1x96xf32> to vector<2x96xf32>
    %78 = arith.addf %76, %77 : vector<2x96xf32>
    %79 = vector.extract_strided_slice %75 {offsets = [0, 0], sizes = [2, 32], strides = [1, 1]} : vector<2x96xf32> to vector<2x32xf32>
    %80 = vector.extract_strided_slice %78 {offsets = [0, 0], sizes = [2, 32], strides = [1, 1]} : vector<2x96xf32> to vector<2x32xf32>
    %81 = arith.addf %79, %80 : vector<2x32xf32>
    %82 = arith.negf %81 : vector<2x32xf32>
    %83 = math.exp %82 : vector<2x32xf32>
    %cst_36 = arith.constant 1.000000e+00 : f32
    %84 = vector.broadcast %cst_36 : f32 to vector<2x32xf32>
    %85 = arith.addf %84, %83 : vector<2x32xf32>
    %86 = arith.divf %84, %85 : vector<2x32xf32>
    %87 = vector.extract_strided_slice %75 {offsets = [0, 32], sizes = [2, 32], strides = [1, 1]} : vector<2x96xf32> to vector<2x32xf32>
    %88 = vector.extract_strided_slice %78 {offsets = [0, 32], sizes = [2, 32], strides = [1, 1]} : vector<2x96xf32> to vector<2x32xf32>
    %89 = arith.addf %87, %88 : vector<2x32xf32>
    %90 = arith.negf %89 : vector<2x32xf32>
    %91 = math.exp %90 : vector<2x32xf32>
    %cst_37 = arith.constant 1.000000e+00 : f32
    %92 = vector.broadcast %cst_37 : f32 to vector<2x32xf32>
    %93 = arith.addf %92, %91 : vector<2x32xf32>
    %94 = arith.divf %92, %93 : vector<2x32xf32>
    %95 = vector.extract_strided_slice %75 {offsets = [0, 64], sizes = [2, 32], strides = [1, 1]} : vector<2x96xf32> to vector<2x32xf32>
    %96 = vector.extract_strided_slice %78 {offsets = [0, 64], sizes = [2, 32], strides = [1, 1]} : vector<2x96xf32> to vector<2x32xf32>
    %97 = arith.mulf %86, %96 : vector<2x32xf32>
    %98 = arith.addf %95, %97 : vector<2x32xf32>
    %99 = math.tanh %98 : vector<2x32xf32>
    %cst_38 = arith.constant 1.000000e+00 : f32
    %100 = vector.broadcast %cst_38 : f32 to vector<2x32xf32>
    %101 = arith.subf %100, %94 : vector<2x32xf32>
    %102 = arith.mulf %101, %99 : vector<2x32xf32>
    %103 = arith.mulf %94, %44 : vector<2x32xf32>
    %104 = arith.addf %102, %103 : vector<2x32xf32>
    %c0_39 = arith.constant 0 : index
    %c0_40 = arith.constant 0 : index
    %105 = vector.load %arg10[%c0_39, %c0_40] : memref<16x64xf32, #tpu.memory_space<vmem>>, vector<2x32xf32>
    tpu.vector_store %arg10[%c0_39, %c0_40], %74 {strides = array<i32>} : memref<16x64xf32, #tpu.memory_space<vmem>>, vector<2x32xf32>,
    %c14_41 = arith.constant 14 : index
    %c32 = arith.constant 32 : index
    %106 = vector.load %arg10[%c14_41, %c32] : memref<16x64xf32, #tpu.memory_space<vmem>>, vector<2x32xf32>
    tpu.vector_store %arg10[%c14_41, %c32], %104 {strides = array<i32>} : memref<16x64xf32, #tpu.memory_space<vmem>>, vector<2x32xf32>,
    %c2 = arith.constant 2 : index
    %c0_42 = arith.constant 0 : index
    %107 = vector.load %arg11[%c2, %c0_42] : memref<16x192xf32, #tpu.memory_space<vmem>>, vector<2x96xf32>
    %cst_43 = arith.constant dense<0.000000e+00> : vector<2x96xf32>
    %108 = tpu.matmul %74, %39, %cst_43 {dimension_numbers = #tpu.dot_dimension_numbers<[1], [0], [0], [1], [0, 0, 1, 1], [], []>} : vector<2x32xf32>, vector<32x96xf32>, vector<2x96xf32> -> vector<2x96xf32>
    %109 = vector.broadcast %41 : vector<1x96xf32> to vector<2x96xf32>
    %110 = arith.addf %108, %109 : vector<2x96xf32>
    %111 = vector.extract_strided_slice %107 {offsets = [0, 0], sizes = [2, 32], strides = [1, 1]} : vector<2x96xf32> to vector<2x32xf32>
    %112 = vector.extract_strided_slice %110 {offsets = [0, 0], sizes = [2, 32], strides = [1, 1]} : vector<2x96xf32> to vector<2x32xf32>
    %113 = arith.addf %111, %112 : vector<2x32xf32>
    %114 = arith.negf %113 : vector<2x32xf32>
    %115 = math.exp %114 : vector<2x32xf32>
    %cst_44 = arith.constant 1.000000e+00 : f32
    %116 = vector.broadcast %cst_44 : f32 to vector<2x32xf32>
    %117 = arith.addf %116, %115 : vector<2x32xf32>
    %118 = arith.divf %116, %117 : vector<2x32xf32>
    %119 = vector.extract_strided_slice %107 {offsets = [0, 32], sizes = [2, 32], strides = [1, 1]} : vector<2x96xf32> to vector<2x32xf32>
    %120 = vector.extract_strided_slice %110 {offsets = [0, 32], sizes = [2, 32], strides = [1, 1]} : vector<2x96xf32> to vector<2x32xf32>
    %121 = arith.addf %119, %120 : vector<2x32xf32>
    %122 = arith.negf %121 : vector<2x32xf32>
    %123 = math.exp %122 : vector<2x32xf32>
    %cst_45 = arith.constant 1.000000e+00 : f32
    %124 = vector.broadcast %cst_45 : f32 to vector<2x32xf32>
    %125 = arith.addf %124, %123 : vector<2x32xf32>
    %126 = arith.divf %124, %125 : vector<2x32xf32>
    %127 = vector.extract_strided_slice %107 {offsets = [0, 64], sizes = [2, 32], strides = [1, 1]} : vector<2x96xf32> to vector<2x32xf32>
    %128 = vector.extract_strided_slice %110 {offsets = [0, 64], sizes = [2, 32], strides = [1, 1]} : vector<2x96xf32> to vector<2x32xf32>
    %129 = arith.mulf %118, %128 : vector<2x32xf32>
    %130 = arith.addf %127, %129 : vector<2x32xf32>
    %131 = math.tanh %130 : vector<2x32xf32>
    %cst_46 = arith.constant 1.000000e+00 : f32
    %132 = vector.broadcast %cst_46 : f32 to vector<2x32xf32>
    %133 = arith.subf %132, %126 : vector<2x32xf32>
    %134 = arith.mulf %133, %131 : vector<2x32xf32>
    %135 = arith.mulf %126, %74 : vector<2x32xf32>
    %136 = arith.addf %134, %135 : vector<2x32xf32>
    %c12 = arith.constant 12 : index
    %c96_47 = arith.constant 96 : index
    %137 = vector.load %arg11[%c12, %c96_47] : memref<16x192xf32, #tpu.memory_space<vmem>>, vector<2x96xf32>
    %cst_48 = arith.constant dense<0.000000e+00> : vector<2x96xf32>
    %138 = tpu.matmul %104, %40, %cst_48 {dimension_numbers = #tpu.dot_dimension_numbers<[1], [0], [0], [1], [0, 0, 1, 1], [], []>} : vector<2x32xf32>, vector<32x96xf32>, vector<2x96xf32> -> vector<2x96xf32>
    %139 = vector.broadcast %42 : vector<1x96xf32> to vector<2x96xf32>
    %140 = arith.addf %138, %139 : vector<2x96xf32>
    %141 = vector.extract_strided_slice %137 {offsets = [0, 0], sizes = [2, 32], strides = [1, 1]} : vector<2x96xf32> to vector<2x32xf32>
    %142 = vector.extract_strided_slice %140 {offsets = [0, 0], sizes = [2, 32], strides = [1, 1]} : vector<2x96xf32> to vector<2x32xf32>
    %143 = arith.addf %141, %142 : vector<2x32xf32>
    %144 = arith.negf %143 : vector<2x32xf32>
    %145 = math.exp %144 : vector<2x32xf32>
    %cst_49 = arith.constant 1.000000e+00 : f32
    %146 = vector.broadcast %cst_49 : f32 to vector<2x32xf32>
    %147 = arith.addf %146, %145 : vector<2x32xf32>
    %148 = arith.divf %146, %147 : vector<2x32xf32>
    %149 = vector.extract_strided_slice %137 {offsets = [0, 32], sizes = [2, 32], strides = [1, 1]} : vector<2x96xf32> to vector<2x32xf32>
    %150 = vector.extract_strided_slice %140 {offsets = [0, 32], sizes = [2, 32], strides = [1, 1]} : vector<2x96xf32> to vector<2x32xf32>
    %151 = arith.addf %149, %150 : vector<2x32xf32>
    %152 = arith.negf %151 : vector<2x32xf32>
    %153 = math.exp %152 : vector<2x32xf32>
    %cst_50 = arith.constant 1.000000e+00 : f32
    %154 = vector.broadcast %cst_50 : f32 to vector<2x32xf32>
    %155 = arith.addf %154, %153 : vector<2x32xf32>
    %156 = arith.divf %154, %155 : vector<2x32xf32>
    %157 = vector.extract_strided_slice %137 {offsets = [0, 64], sizes = [2, 32], strides = [1, 1]} : vector<2x96xf32> to vector<2x32xf32>
    %158 = vector.extract_strided_slice %140 {offsets = [0, 64], sizes = [2, 32], strides = [1, 1]} : vector<2x96xf32> to vector<2x32xf32>
    %159 = arith.mulf %148, %158 : vector<2x32xf32>
    %160 = arith.addf %157, %159 : vector<2x32xf32>
    %161 = math.tanh %160 : vector<2x32xf32>
    %cst_51 = arith.constant 1.000000e+00 : f32
    %162 = vector.broadcast %cst_51 : f32 to vector<2x32xf32>
    %163 = arith.subf %162, %156 : vector<2x32xf32>
    %164 = arith.mulf %163, %161 : vector<2x32xf32>
    %165 = arith.mulf %156, %104 : vector<2x32xf32>
    %166 = arith.addf %164, %165 : vector<2x32xf32>
    %c2_52 = arith.constant 2 : index
    %c0_53 = arith.constant 0 : index
    %167 = vector.load %arg10[%c2_52, %c0_53] : memref<16x64xf32, #tpu.memory_space<vmem>>, vector<2x32xf32>
    tpu.vector_store %arg10[%c2_52, %c0_53], %136 {strides = array<i32>} : memref<16x64xf32, #tpu.memory_space<vmem>>, vector<2x32xf32>,
    %c12_54 = arith.constant 12 : index
    %c32_55 = arith.constant 32 : index
    %168 = vector.load %arg10[%c12_54, %c32_55] : memref<16x64xf32, #tpu.memory_space<vmem>>, vector<2x32xf32>
    tpu.vector_store %arg10[%c12_54, %c32_55], %166 {strides = array<i32>} : memref<16x64xf32, #tpu.memory_space<vmem>>, vector<2x32xf32>,
    %c4 = arith.constant 4 : index
    %c0_56 = arith.constant 0 : index
    %169 = vector.load %arg11[%c4, %c0_56] : memref<16x192xf32, #tpu.memory_space<vmem>>, vector<2x96xf32>
    %cst_57 = arith.constant dense<0.000000e+00> : vector<2x96xf32>
    %170 = tpu.matmul %136, %39, %cst_57 {dimension_numbers = #tpu.dot_dimension_numbers<[1], [0], [0], [1], [0, 0, 1, 1], [], []>} : vector<2x32xf32>, vector<32x96xf32>, vector<2x96xf32> -> vector<2x96xf32>
    %171 = vector.broadcast %41 : vector<1x96xf32> to vector<2x96xf32>
    %172 = arith.addf %170, %171 : vector<2x96xf32>
    %173 = vector.extract_strided_slice %169 {offsets = [0, 0], sizes = [2, 32], strides = [1, 1]} : vector<2x96xf32> to vector<2x32xf32>
    %174 = vector.extract_strided_slice %172 {offsets = [0, 0], sizes = [2, 32], strides = [1, 1]} : vector<2x96xf32> to vector<2x32xf32>
    %175 = arith.addf %173, %174 : vector<2x32xf32>
    %176 = arith.negf %175 : vector<2x32xf32>
    %177 = math.exp %176 : vector<2x32xf32>
    %cst_58 = arith.constant 1.000000e+00 : f32
    %178 = vector.broadcast %cst_58 : f32 to vector<2x32xf32>
    %179 = arith.addf %178, %177 : vector<2x32xf32>
    %180 = arith.divf %178, %179 : vector<2x32xf32>
    %181 = vector.extract_strided_slice %169 {offsets = [0, 32], sizes = [2, 32], strides = [1, 1]} : vector<2x96xf32> to vector<2x32xf32>
    %182 = vector.extract_strided_slice %172 {offsets = [0, 32], sizes = [2, 32], strides = [1, 1]} : vector<2x96xf32> to vector<2x32xf32>
    %183 = arith.addf %181, %182 : vector<2x32xf32>
    %184 = arith.negf %183 : vector<2x32xf32>
    %185 = math.exp %184 : vector<2x32xf32>
    %cst_59 = arith.constant 1.000000e+00 : f32
    %186 = vector.broadcast %cst_59 : f32 to vector<2x32xf32>
    %187 = arith.addf %186, %185 : vector<2x32xf32>
    %188 = arith.divf %186, %187 : vector<2x32xf32>
    %189 = vector.extract_strided_slice %169 {offsets = [0, 64], sizes = [2, 32], strides = [1, 1]} : vector<2x96xf32> to vector<2x32xf32>
    %190 = vector.extract_strided_slice %172 {offsets = [0, 64], sizes = [2, 32], strides = [1, 1]} : vector<2x96xf32> to vector<2x32xf32>
    %191 = arith.mulf %180, %190 : vector<2x32xf32>
    %192 = arith.addf %189, %191 : vector<2x32xf32>
    %193 = math.tanh %192 : vector<2x32xf32>
    %cst_60 = arith.constant 1.000000e+00 : f32
    %194 = vector.broadcast %cst_60 : f32 to vector<2x32xf32>
    %195 = arith.subf %194, %188 : vector<2x32xf32>
    %196 = arith.mulf %195, %193 : vector<2x32xf32>
    %197 = arith.mulf %188, %136 : vector<2x32xf32>
    %198 = arith.addf %196, %197 : vector<2x32xf32>
    %c10 = arith.constant 10 : index
    %c96_61 = arith.constant 96 : index
    %199 = vector.load %arg11[%c10, %c96_61] : memref<16x192xf32, #tpu.memory_space<vmem>>, vector<2x96xf32>
    %cst_62 = arith.constant dense<0.000000e+00> : vector<2x96xf32>
    %200 = tpu.matmul %166, %40, %cst_62 {dimension_numbers = #tpu.dot_dimension_numbers<[1], [0], [0], [1], [0, 0, 1, 1], [], []>} : vector<2x32xf32>, vector<32x96xf32>, vector<2x96xf32> -> vector<2x96xf32>
    %201 = vector.broadcast %42 : vector<1x96xf32> to vector<2x96xf32>
    %202 = arith.addf %200, %201 : vector<2x96xf32>
    %203 = vector.extract_strided_slice %199 {offsets = [0, 0], sizes = [2, 32], strides = [1, 1]} : vector<2x96xf32> to vector<2x32xf32>
    %204 = vector.extract_strided_slice %202 {offsets = [0, 0], sizes = [2, 32], strides = [1, 1]} : vector<2x96xf32> to vector<2x32xf32>
    %205 = arith.addf %203, %204 : vector<2x32xf32>
    %206 = arith.negf %205 : vector<2x32xf32>
    %207 = math.exp %206 : vector<2x32xf32>
    %cst_63 = arith.constant 1.000000e+00 : f32
    %208 = vector.broadcast %cst_63 : f32 to vector<2x32xf32>
    %209 = arith.addf %208, %207 : vector<2x32xf32>
    %210 = arith.divf %208, %209 : vector<2x32xf32>
    %211 = vector.extract_strided_slice %199 {offsets = [0, 32], sizes = [2, 32], strides = [1, 1]} : vector<2x96xf32> to vector<2x32xf32>
    %212 = vector.extract_strided_slice %202 {offsets = [0, 32], sizes = [2, 32], strides = [1, 1]} : vector<2x96xf32> to vector<2x32xf32>
    %213 = arith.addf %211, %212 : vector<2x32xf32>
    %214 = arith.negf %213 : vector<2x32xf32>
    %215 = math.exp %214 : vector<2x32xf32>
    %cst_64 = arith.constant 1.000000e+00 : f32
    %216 = vector.broadcast %cst_64 : f32 to vector<2x32xf32>
    %217 = arith.addf %216, %215 : vector<2x32xf32>
    %218 = arith.divf %216, %217 : vector<2x32xf32>
    %219 = vector.extract_strided_slice %199 {offsets = [0, 64], sizes = [2, 32], strides = [1, 1]} : vector<2x96xf32> to vector<2x32xf32>
    %220 = vector.extract_strided_slice %202 {offsets = [0, 64], sizes = [2, 32], strides = [1, 1]} : vector<2x96xf32> to vector<2x32xf32>
    %221 = arith.mulf %210, %220 : vector<2x32xf32>
    %222 = arith.addf %219, %221 : vector<2x32xf32>
    %223 = math.tanh %222 : vector<2x32xf32>
    %cst_65 = arith.constant 1.000000e+00 : f32
    %224 = vector.broadcast %cst_65 : f32 to vector<2x32xf32>
    %225 = arith.subf %224, %218 : vector<2x32xf32>
    %226 = arith.mulf %225, %223 : vector<2x32xf32>
    %227 = arith.mulf %218, %166 : vector<2x32xf32>
    %228 = arith.addf %226, %227 : vector<2x32xf32>
    %c4_66 = arith.constant 4 : index
    %c0_67 = arith.constant 0 : index
    %229 = vector.load %arg10[%c4_66, %c0_67] : memref<16x64xf32, #tpu.memory_space<vmem>>, vector<2x32xf32>
    tpu.vector_store %arg10[%c4_66, %c0_67], %198 {strides = array<i32>} : memref<16x64xf32, #tpu.memory_space<vmem>>, vector<2x32xf32>,
    %c10_68 = arith.constant 10 : index
    %c32_69 = arith.constant 32 : index
    %230 = vector.load %arg10[%c10_68, %c32_69] : memref<16x64xf32, #tpu.memory_space<vmem>>, vector<2x32xf32>
    tpu.vector_store %arg10[%c10_68, %c32_69], %228 {strides = array<i32>} : memref<16x64xf32, #tpu.memory_space<vmem>>, vector<2x32xf32>,
    %c6 = arith.constant 6 : index
    %c0_70 = arith.constant 0 : index
    %231 = vector.load %arg11[%c6, %c0_70] : memref<16x192xf32, #tpu.memory_space<vmem>>, vector<2x96xf32>
    %cst_71 = arith.constant dense<0.000000e+00> : vector<2x96xf32>
    %232 = tpu.matmul %198, %39, %cst_71 {dimension_numbers = #tpu.dot_dimension_numbers<[1], [0], [0], [1], [0, 0, 1, 1], [], []>} : vector<2x32xf32>, vector<32x96xf32>, vector<2x96xf32> -> vector<2x96xf32>
    %233 = vector.broadcast %41 : vector<1x96xf32> to vector<2x96xf32>
    %234 = arith.addf %232, %233 : vector<2x96xf32>
    %235 = vector.extract_strided_slice %231 {offsets = [0, 0], sizes = [2, 32], strides = [1, 1]} : vector<2x96xf32> to vector<2x32xf32>
    %236 = vector.extract_strided_slice %234 {offsets = [0, 0], sizes = [2, 32], strides = [1, 1]} : vector<2x96xf32> to vector<2x32xf32>
    %237 = arith.addf %235, %236 : vector<2x32xf32>
    %238 = arith.negf %237 : vector<2x32xf32>
    %239 = math.exp %238 : vector<2x32xf32>
    %cst_72 = arith.constant 1.000000e+00 : f32
    %240 = vector.broadcast %cst_72 : f32 to vector<2x32xf32>
    %241 = arith.addf %240, %239 : vector<2x32xf32>
    %242 = arith.divf %240, %241 : vector<2x32xf32>
    %243 = vector.extract_strided_slice %231 {offsets = [0, 32], sizes = [2, 32], strides = [1, 1]} : vector<2x96xf32> to vector<2x32xf32>
    %244 = vector.extract_strided_slice %234 {offsets = [0, 32], sizes = [2, 32], strides = [1, 1]} : vector<2x96xf32> to vector<2x32xf32>
    %245 = arith.addf %243, %244 : vector<2x32xf32>
    %246 = arith.negf %245 : vector<2x32xf32>
    %247 = math.exp %246 : vector<2x32xf32>
    %cst_73 = arith.constant 1.000000e+00 : f32
    %248 = vector.broadcast %cst_73 : f32 to vector<2x32xf32>
    %249 = arith.addf %248, %247 : vector<2x32xf32>
    %250 = arith.divf %248, %249 : vector<2x32xf32>
    %251 = vector.extract_strided_slice %231 {offsets = [0, 64], sizes = [2, 32], strides = [1, 1]} : vector<2x96xf32> to vector<2x32xf32>
    %252 = vector.extract_strided_slice %234 {offsets = [0, 64], sizes = [2, 32], strides = [1, 1]} : vector<2x96xf32> to vector<2x32xf32>
    %253 = arith.mulf %242, %252 : vector<2x32xf32>
    %254 = arith.addf %251, %253 : vector<2x32xf32>
    %255 = math.tanh %254 : vector<2x32xf32>
    %cst_74 = arith.constant 1.000000e+00 : f32
    %256 = vector.broadcast %cst_74 : f32 to vector<2x32xf32>
    %257 = arith.subf %256, %250 : vector<2x32xf32>
    %258 = arith.mulf %257, %255 : vector<2x32xf32>
    %259 = arith.mulf %250, %198 : vector<2x32xf32>
    %260 = arith.addf %258, %259 : vector<2x32xf32>
    %c8 = arith.constant 8 : index
    %c96_75 = arith.constant 96 : index
    %261 = vector.load %arg11[%c8, %c96_75] : memref<16x192xf32, #tpu.memory_space<vmem>>, vector<2x96xf32>
    %cst_76 = arith.constant dense<0.000000e+00> : vector<2x96xf32>
    %262 = tpu.matmul %228, %40, %cst_76 {dimension_numbers = #tpu.dot_dimension_numbers<[1], [0], [0], [1], [0, 0, 1, 1], [], []>} : vector<2x32xf32>, vector<32x96xf32>, vector<2x96xf32> -> vector<2x96xf32>
    %263 = vector.broadcast %42 : vector<1x96xf32> to vector<2x96xf32>
    %264 = arith.addf %262, %263 : vector<2x96xf32>
    %265 = vector.extract_strided_slice %261 {offsets = [0, 0], sizes = [2, 32], strides = [1, 1]} : vector<2x96xf32> to vector<2x32xf32>
    %266 = vector.extract_strided_slice %264 {offsets = [0, 0], sizes = [2, 32], strides = [1, 1]} : vector<2x96xf32> to vector<2x32xf32>
    %267 = arith.addf %265, %266 : vector<2x32xf32>
    %268 = arith.negf %267 : vector<2x32xf32>
    %269 = math.exp %268 : vector<2x32xf32>
    %cst_77 = arith.constant 1.000000e+00 : f32
    %270 = vector.broadcast %cst_77 : f32 to vector<2x32xf32>
    %271 = arith.addf %270, %269 : vector<2x32xf32>
    %272 = arith.divf %270, %271 : vector<2x32xf32>
    %273 = vector.extract_strided_slice %261 {offsets = [0, 32], sizes = [2, 32], strides = [1, 1]} : vector<2x96xf32> to vector<2x32xf32>
    %274 = vector.extract_strided_slice %264 {offsets = [0, 32], sizes = [2, 32], strides = [1, 1]} : vector<2x96xf32> to vector<2x32xf32>
    %275 = arith.addf %273, %274 : vector<2x32xf32>
    %276 = arith.negf %275 : vector<2x32xf32>
    %277 = math.exp %276 : vector<2x32xf32>
    %cst_78 = arith.constant 1.000000e+00 : f32
    %278 = vector.broadcast %cst_78 : f32 to vector<2x32xf32>
    %279 = arith.addf %278, %277 : vector<2x32xf32>
    %280 = arith.divf %278, %279 : vector<2x32xf32>
    %281 = vector.extract_strided_slice %261 {offsets = [0, 64], sizes = [2, 32], strides = [1, 1]} : vector<2x96xf32> to vector<2x32xf32>
    %282 = vector.extract_strided_slice %264 {offsets = [0, 64], sizes = [2, 32], strides = [1, 1]} : vector<2x96xf32> to vector<2x32xf32>
    %283 = arith.mulf %272, %282 : vector<2x32xf32>
    %284 = arith.addf %281, %283 : vector<2x32xf32>
    %285 = math.tanh %284 : vector<2x32xf32>
    %cst_79 = arith.constant 1.000000e+00 : f32
    %286 = vector.broadcast %cst_79 : f32 to vector<2x32xf32>
    %287 = arith.subf %286, %280 : vector<2x32xf32>
    %288 = arith.mulf %287, %285 : vector<2x32xf32>
    %289 = arith.mulf %280, %228 : vector<2x32xf32>
    %290 = arith.addf %288, %289 : vector<2x32xf32>
    %c6_80 = arith.constant 6 : index
    %c0_81 = arith.constant 0 : index
    %291 = vector.load %arg10[%c6_80, %c0_81] : memref<16x64xf32, #tpu.memory_space<vmem>>, vector<2x32xf32>
    tpu.vector_store %arg10[%c6_80, %c0_81], %260 {strides = array<i32>} : memref<16x64xf32, #tpu.memory_space<vmem>>, vector<2x32xf32>,
    %c8_82 = arith.constant 8 : index
    %c32_83 = arith.constant 32 : index
    %292 = vector.load %arg10[%c8_82, %c32_83] : memref<16x64xf32, #tpu.memory_space<vmem>>, vector<2x32xf32>
    tpu.vector_store %arg10[%c8_82, %c32_83], %290 {strides = array<i32>} : memref<16x64xf32, #tpu.memory_space<vmem>>, vector<2x32xf32>,
    %c8_84 = arith.constant 8 : index
    %c0_85 = arith.constant 0 : index
    %293 = vector.load %arg11[%c8_84, %c0_85] : memref<16x192xf32, #tpu.memory_space<vmem>>, vector<2x96xf32>
    %cst_86 = arith.constant dense<0.000000e+00> : vector<2x96xf32>
    %294 = tpu.matmul %260, %39, %cst_86 {dimension_numbers = #tpu.dot_dimension_numbers<[1], [0], [0], [1], [0, 0, 1, 1], [], []>} : vector<2x32xf32>, vector<32x96xf32>, vector<2x96xf32> -> vector<2x96xf32>
    %295 = vector.broadcast %41 : vector<1x96xf32> to vector<2x96xf32>
    %296 = arith.addf %294, %295 : vector<2x96xf32>
    %297 = vector.extract_strided_slice %293 {offsets = [0, 0], sizes = [2, 32], strides = [1, 1]} : vector<2x96xf32> to vector<2x32xf32>
    %298 = vector.extract_strided_slice %296 {offsets = [0, 0], sizes = [2, 32], strides = [1, 1]} : vector<2x96xf32> to vector<2x32xf32>
    %299 = arith.addf %297, %298 : vector<2x32xf32>
    %300 = arith.negf %299 : vector<2x32xf32>
    %301 = math.exp %300 : vector<2x32xf32>
    %cst_87 = arith.constant 1.000000e+00 : f32
    %302 = vector.broadcast %cst_87 : f32 to vector<2x32xf32>
    %303 = arith.addf %302, %301 : vector<2x32xf32>
    %304 = arith.divf %302, %303 : vector<2x32xf32>
    %305 = vector.extract_strided_slice %293 {offsets = [0, 32], sizes = [2, 32], strides = [1, 1]} : vector<2x96xf32> to vector<2x32xf32>
    %306 = vector.extract_strided_slice %296 {offsets = [0, 32], sizes = [2, 32], strides = [1, 1]} : vector<2x96xf32> to vector<2x32xf32>
    %307 = arith.addf %305, %306 : vector<2x32xf32>
    %308 = arith.negf %307 : vector<2x32xf32>
    %309 = math.exp %308 : vector<2x32xf32>
    %cst_88 = arith.constant 1.000000e+00 : f32
    %310 = vector.broadcast %cst_88 : f32 to vector<2x32xf32>
    %311 = arith.addf %310, %309 : vector<2x32xf32>
    %312 = arith.divf %310, %311 : vector<2x32xf32>
    %313 = vector.extract_strided_slice %293 {offsets = [0, 64], sizes = [2, 32], strides = [1, 1]} : vector<2x96xf32> to vector<2x32xf32>
    %314 = vector.extract_strided_slice %296 {offsets = [0, 64], sizes = [2, 32], strides = [1, 1]} : vector<2x96xf32> to vector<2x32xf32>
    %315 = arith.mulf %304, %314 : vector<2x32xf32>
    %316 = arith.addf %313, %315 : vector<2x32xf32>
    %317 = math.tanh %316 : vector<2x32xf32>
    %cst_89 = arith.constant 1.000000e+00 : f32
    %318 = vector.broadcast %cst_89 : f32 to vector<2x32xf32>
    %319 = arith.subf %318, %312 : vector<2x32xf32>
    %320 = arith.mulf %319, %317 : vector<2x32xf32>
    %321 = arith.mulf %312, %260 : vector<2x32xf32>
    %322 = arith.addf %320, %321 : vector<2x32xf32>
    %c6_90 = arith.constant 6 : index
    %c96_91 = arith.constant 96 : index
    %323 = vector.load %arg11[%c6_90, %c96_91] : memref<16x192xf32, #tpu.memory_space<vmem>>, vector<2x96xf32>
    %cst_92 = arith.constant dense<0.000000e+00> : vector<2x96xf32>
    %324 = tpu.matmul %290, %40, %cst_92 {dimension_numbers = #tpu.dot_dimension_numbers<[1], [0], [0], [1], [0, 0, 1, 1], [], []>} : vector<2x32xf32>, vector<32x96xf32>, vector<2x96xf32> -> vector<2x96xf32>
    %325 = vector.broadcast %42 : vector<1x96xf32> to vector<2x96xf32>
    %326 = arith.addf %324, %325 : vector<2x96xf32>
    %327 = vector.extract_strided_slice %323 {offsets = [0, 0], sizes = [2, 32], strides = [1, 1]} : vector<2x96xf32> to vector<2x32xf32>
    %328 = vector.extract_strided_slice %326 {offsets = [0, 0], sizes = [2, 32], strides = [1, 1]} : vector<2x96xf32> to vector<2x32xf32>
    %329 = arith.addf %327, %328 : vector<2x32xf32>
    %330 = arith.negf %329 : vector<2x32xf32>
    %331 = math.exp %330 : vector<2x32xf32>
    %cst_93 = arith.constant 1.000000e+00 : f32
    %332 = vector.broadcast %cst_93 : f32 to vector<2x32xf32>
    %333 = arith.addf %332, %331 : vector<2x32xf32>
    %334 = arith.divf %332, %333 : vector<2x32xf32>
    %335 = vector.extract_strided_slice %323 {offsets = [0, 32], sizes = [2, 32], strides = [1, 1]} : vector<2x96xf32> to vector<2x32xf32>
    %336 = vector.extract_strided_slice %326 {offsets = [0, 32], sizes = [2, 32], strides = [1, 1]} : vector<2x96xf32> to vector<2x32xf32>
    %337 = arith.addf %335, %336 : vector<2x32xf32>
    %338 = arith.negf %337 : vector<2x32xf32>
    %339 = math.exp %338 : vector<2x32xf32>
    %cst_94 = arith.constant 1.000000e+00 : f32
    %340 = vector.broadcast %cst_94 : f32 to vector<2x32xf32>
    %341 = arith.addf %340, %339 : vector<2x32xf32>
    %342 = arith.divf %340, %341 : vector<2x32xf32>
    %343 = vector.extract_strided_slice %323 {offsets = [0, 64], sizes = [2, 32], strides = [1, 1]} : vector<2x96xf32> to vector<2x32xf32>
    %344 = vector.extract_strided_slice %326 {offsets = [0, 64], sizes = [2, 32], strides = [1, 1]} : vector<2x96xf32> to vector<2x32xf32>
    %345 = arith.mulf %334, %344 : vector<2x32xf32>
    %346 = arith.addf %343, %345 : vector<2x32xf32>
    %347 = math.tanh %346 : vector<2x32xf32>
    %cst_95 = arith.constant 1.000000e+00 : f32
    %348 = vector.broadcast %cst_95 : f32 to vector<2x32xf32>
    %349 = arith.subf %348, %342 : vector<2x32xf32>
    %350 = arith.mulf %349, %347 : vector<2x32xf32>
    %351 = arith.mulf %342, %290 : vector<2x32xf32>
    %352 = arith.addf %350, %351 : vector<2x32xf32>
    %c8_96 = arith.constant 8 : index
    %c0_97 = arith.constant 0 : index
    %353 = vector.load %arg10[%c8_96, %c0_97] : memref<16x64xf32, #tpu.memory_space<vmem>>, vector<2x32xf32>
    tpu.vector_store %arg10[%c8_96, %c0_97], %322 {strides = array<i32>} : memref<16x64xf32, #tpu.memory_space<vmem>>, vector<2x32xf32>,
    %c6_98 = arith.constant 6 : index
    %c32_99 = arith.constant 32 : index
    %354 = vector.load %arg10[%c6_98, %c32_99] : memref<16x64xf32, #tpu.memory_space<vmem>>, vector<2x32xf32>
    tpu.vector_store %arg10[%c6_98, %c32_99], %352 {strides = array<i32>} : memref<16x64xf32, #tpu.memory_space<vmem>>, vector<2x32xf32>,
    %c10_100 = arith.constant 10 : index
    %c0_101 = arith.constant 0 : index
    %355 = vector.load %arg11[%c10_100, %c0_101] : memref<16x192xf32, #tpu.memory_space<vmem>>, vector<2x96xf32>
    %cst_102 = arith.constant dense<0.000000e+00> : vector<2x96xf32>
    %356 = tpu.matmul %322, %39, %cst_102 {dimension_numbers = #tpu.dot_dimension_numbers<[1], [0], [0], [1], [0, 0, 1, 1], [], []>} : vector<2x32xf32>, vector<32x96xf32>, vector<2x96xf32> -> vector<2x96xf32>
    %357 = vector.broadcast %41 : vector<1x96xf32> to vector<2x96xf32>
    %358 = arith.addf %356, %357 : vector<2x96xf32>
    %359 = vector.extract_strided_slice %355 {offsets = [0, 0], sizes = [2, 32], strides = [1, 1]} : vector<2x96xf32> to vector<2x32xf32>
    %360 = vector.extract_strided_slice %358 {offsets = [0, 0], sizes = [2, 32], strides = [1, 1]} : vector<2x96xf32> to vector<2x32xf32>
    %361 = arith.addf %359, %360 : vector<2x32xf32>
    %362 = arith.negf %361 : vector<2x32xf32>
    %363 = math.exp %362 : vector<2x32xf32>
    %cst_103 = arith.constant 1.000000e+00 : f32
    %364 = vector.broadcast %cst_103 : f32 to vector<2x32xf32>
    %365 = arith.addf %364, %363 : vector<2x32xf32>
    %366 = arith.divf %364, %365 : vector<2x32xf32>
    %367 = vector.extract_strided_slice %355 {offsets = [0, 32], sizes = [2, 32], strides = [1, 1]} : vector<2x96xf32> to vector<2x32xf32>
    %368 = vector.extract_strided_slice %358 {offsets = [0, 32], sizes = [2, 32], strides = [1, 1]} : vector<2x96xf32> to vector<2x32xf32>
    %369 = arith.addf %367, %368 : vector<2x32xf32>
    %370 = arith.negf %369 : vector<2x32xf32>
    %371 = math.exp %370 : vector<2x32xf32>
    %cst_104 = arith.constant 1.000000e+00 : f32
    %372 = vector.broadcast %cst_104 : f32 to vector<2x32xf32>
    %373 = arith.addf %372, %371 : vector<2x32xf32>
    %374 = arith.divf %372, %373 : vector<2x32xf32>
    %375 = vector.extract_strided_slice %355 {offsets = [0, 64], sizes = [2, 32], strides = [1, 1]} : vector<2x96xf32> to vector<2x32xf32>
    %376 = vector.extract_strided_slice %358 {offsets = [0, 64], sizes = [2, 32], strides = [1, 1]} : vector<2x96xf32> to vector<2x32xf32>
    %377 = arith.mulf %366, %376 : vector<2x32xf32>
    %378 = arith.addf %375, %377 : vector<2x32xf32>
    %379 = math.tanh %378 : vector<2x32xf32>
    %cst_105 = arith.constant 1.000000e+00 : f32
    %380 = vector.broadcast %cst_105 : f32 to vector<2x32xf32>
    %381 = arith.subf %380, %374 : vector<2x32xf32>
    %382 = arith.mulf %381, %379 : vector<2x32xf32>
    %383 = arith.mulf %374, %322 : vector<2x32xf32>
    %384 = arith.addf %382, %383 : vector<2x32xf32>
    %c4_106 = arith.constant 4 : index
    %c96_107 = arith.constant 96 : index
    %385 = vector.load %arg11[%c4_106, %c96_107] : memref<16x192xf32, #tpu.memory_space<vmem>>, vector<2x96xf32>
    %cst_108 = arith.constant dense<0.000000e+00> : vector<2x96xf32>
    %386 = tpu.matmul %352, %40, %cst_108 {dimension_numbers = #tpu.dot_dimension_numbers<[1], [0], [0], [1], [0, 0, 1, 1], [], []>} : vector<2x32xf32>, vector<32x96xf32>, vector<2x96xf32> -> vector<2x96xf32>
    %387 = vector.broadcast %42 : vector<1x96xf32> to vector<2x96xf32>
    %388 = arith.addf %386, %387 : vector<2x96xf32>
    %389 = vector.extract_strided_slice %385 {offsets = [0, 0], sizes = [2, 32], strides = [1, 1]} : vector<2x96xf32> to vector<2x32xf32>
    %390 = vector.extract_strided_slice %388 {offsets = [0, 0], sizes = [2, 32], strides = [1, 1]} : vector<2x96xf32> to vector<2x32xf32>
    %391 = arith.addf %389, %390 : vector<2x32xf32>
    %392 = arith.negf %391 : vector<2x32xf32>
    %393 = math.exp %392 : vector<2x32xf32>
    %cst_109 = arith.constant 1.000000e+00 : f32
    %394 = vector.broadcast %cst_109 : f32 to vector<2x32xf32>
    %395 = arith.addf %394, %393 : vector<2x32xf32>
    %396 = arith.divf %394, %395 : vector<2x32xf32>
    %397 = vector.extract_strided_slice %385 {offsets = [0, 32], sizes = [2, 32], strides = [1, 1]} : vector<2x96xf32> to vector<2x32xf32>
    %398 = vector.extract_strided_slice %388 {offsets = [0, 32], sizes = [2, 32], strides = [1, 1]} : vector<2x96xf32> to vector<2x32xf32>
    %399 = arith.addf %397, %398 : vector<2x32xf32>
    %400 = arith.negf %399 : vector<2x32xf32>
    %401 = math.exp %400 : vector<2x32xf32>
    %cst_110 = arith.constant 1.000000e+00 : f32
    %402 = vector.broadcast %cst_110 : f32 to vector<2x32xf32>
    %403 = arith.addf %402, %401 : vector<2x32xf32>
    %404 = arith.divf %402, %403 : vector<2x32xf32>
    %405 = vector.extract_strided_slice %385 {offsets = [0, 64], sizes = [2, 32], strides = [1, 1]} : vector<2x96xf32> to vector<2x32xf32>
    %406 = vector.extract_strided_slice %388 {offsets = [0, 64], sizes = [2, 32], strides = [1, 1]} : vector<2x96xf32> to vector<2x32xf32>
    %407 = arith.mulf %396, %406 : vector<2x32xf32>
    %408 = arith.addf %405, %407 : vector<2x32xf32>
    %409 = math.tanh %408 : vector<2x32xf32>
    %cst_111 = arith.constant 1.000000e+00 : f32
    %410 = vector.broadcast %cst_111 : f32 to vector<2x32xf32>
    %411 = arith.subf %410, %404 : vector<2x32xf32>
    %412 = arith.mulf %411, %409 : vector<2x32xf32>
    %413 = arith.mulf %404, %352 : vector<2x32xf32>
    %414 = arith.addf %412, %413 : vector<2x32xf32>
    %c10_112 = arith.constant 10 : index
    %c0_113 = arith.constant 0 : index
    %415 = vector.load %arg10[%c10_112, %c0_113] : memref<16x64xf32, #tpu.memory_space<vmem>>, vector<2x32xf32>
    tpu.vector_store %arg10[%c10_112, %c0_113], %384 {strides = array<i32>} : memref<16x64xf32, #tpu.memory_space<vmem>>, vector<2x32xf32>,
    %c4_114 = arith.constant 4 : index
    %c32_115 = arith.constant 32 : index
    %416 = vector.load %arg10[%c4_114, %c32_115] : memref<16x64xf32, #tpu.memory_space<vmem>>, vector<2x32xf32>
    tpu.vector_store %arg10[%c4_114, %c32_115], %414 {strides = array<i32>} : memref<16x64xf32, #tpu.memory_space<vmem>>, vector<2x32xf32>,
    %c12_116 = arith.constant 12 : index
    %c0_117 = arith.constant 0 : index
    %417 = vector.load %arg11[%c12_116, %c0_117] : memref<16x192xf32, #tpu.memory_space<vmem>>, vector<2x96xf32>
    %cst_118 = arith.constant dense<0.000000e+00> : vector<2x96xf32>
    %418 = tpu.matmul %384, %39, %cst_118 {dimension_numbers = #tpu.dot_dimension_numbers<[1], [0], [0], [1], [0, 0, 1, 1], [], []>} : vector<2x32xf32>, vector<32x96xf32>, vector<2x96xf32> -> vector<2x96xf32>
    %419 = vector.broadcast %41 : vector<1x96xf32> to vector<2x96xf32>
    %420 = arith.addf %418, %419 : vector<2x96xf32>
    %421 = vector.extract_strided_slice %417 {offsets = [0, 0], sizes = [2, 32], strides = [1, 1]} : vector<2x96xf32> to vector<2x32xf32>
    %422 = vector.extract_strided_slice %420 {offsets = [0, 0], sizes = [2, 32], strides = [1, 1]} : vector<2x96xf32> to vector<2x32xf32>
    %423 = arith.addf %421, %422 : vector<2x32xf32>
    %424 = arith.negf %423 : vector<2x32xf32>
    %425 = math.exp %424 : vector<2x32xf32>
    %cst_119 = arith.constant 1.000000e+00 : f32
    %426 = vector.broadcast %cst_119 : f32 to vector<2x32xf32>
    %427 = arith.addf %426, %425 : vector<2x32xf32>
    %428 = arith.divf %426, %427 : vector<2x32xf32>
    %429 = vector.extract_strided_slice %417 {offsets = [0, 32], sizes = [2, 32], strides = [1, 1]} : vector<2x96xf32> to vector<2x32xf32>
    %430 = vector.extract_strided_slice %420 {offsets = [0, 32], sizes = [2, 32], strides = [1, 1]} : vector<2x96xf32> to vector<2x32xf32>
    %431 = arith.addf %429, %430 : vector<2x32xf32>
    %432 = arith.negf %431 : vector<2x32xf32>
    %433 = math.exp %432 : vector<2x32xf32>
    %cst_120 = arith.constant 1.000000e+00 : f32
    %434 = vector.broadcast %cst_120 : f32 to vector<2x32xf32>
    %435 = arith.addf %434, %433 : vector<2x32xf32>
    %436 = arith.divf %434, %435 : vector<2x32xf32>
    %437 = vector.extract_strided_slice %417 {offsets = [0, 64], sizes = [2, 32], strides = [1, 1]} : vector<2x96xf32> to vector<2x32xf32>
    %438 = vector.extract_strided_slice %420 {offsets = [0, 64], sizes = [2, 32], strides = [1, 1]} : vector<2x96xf32> to vector<2x32xf32>
    %439 = arith.mulf %428, %438 : vector<2x32xf32>
    %440 = arith.addf %437, %439 : vector<2x32xf32>
    %441 = math.tanh %440 : vector<2x32xf32>
    %cst_121 = arith.constant 1.000000e+00 : f32
    %442 = vector.broadcast %cst_121 : f32 to vector<2x32xf32>
    %443 = arith.subf %442, %436 : vector<2x32xf32>
    %444 = arith.mulf %443, %441 : vector<2x32xf32>
    %445 = arith.mulf %436, %384 : vector<2x32xf32>
    %446 = arith.addf %444, %445 : vector<2x32xf32>
    %c2_122 = arith.constant 2 : index
    %c96_123 = arith.constant 96 : index
    %447 = vector.load %arg11[%c2_122, %c96_123] : memref<16x192xf32, #tpu.memory_space<vmem>>, vector<2x96xf32>
    %cst_124 = arith.constant dense<0.000000e+00> : vector<2x96xf32>
    %448 = tpu.matmul %414, %40, %cst_124 {dimension_numbers = #tpu.dot_dimension_numbers<[1], [0], [0], [1], [0, 0, 1, 1], [], []>} : vector<2x32xf32>, vector<32x96xf32>, vector<2x96xf32> -> vector<2x96xf32>
    %449 = vector.broadcast %42 : vector<1x96xf32> to vector<2x96xf32>
    %450 = arith.addf %448, %449 : vector<2x96xf32>
    %451 = vector.extract_strided_slice %447 {offsets = [0, 0], sizes = [2, 32], strides = [1, 1]} : vector<2x96xf32> to vector<2x32xf32>
    %452 = vector.extract_strided_slice %450 {offsets = [0, 0], sizes = [2, 32], strides = [1, 1]} : vector<2x96xf32> to vector<2x32xf32>
    %453 = arith.addf %451, %452 : vector<2x32xf32>
    %454 = arith.negf %453 : vector<2x32xf32>
    %455 = math.exp %454 : vector<2x32xf32>
    %cst_125 = arith.constant 1.000000e+00 : f32
    %456 = vector.broadcast %cst_125 : f32 to vector<2x32xf32>
    %457 = arith.addf %456, %455 : vector<2x32xf32>
    %458 = arith.divf %456, %457 : vector<2x32xf32>
    %459 = vector.extract_strided_slice %447 {offsets = [0, 32], sizes = [2, 32], strides = [1, 1]} : vector<2x96xf32> to vector<2x32xf32>
    %460 = vector.extract_strided_slice %450 {offsets = [0, 32], sizes = [2, 32], strides = [1, 1]} : vector<2x96xf32> to vector<2x32xf32>
    %461 = arith.addf %459, %460 : vector<2x32xf32>
    %462 = arith.negf %461 : vector<2x32xf32>
    %463 = math.exp %462 : vector<2x32xf32>
    %cst_126 = arith.constant 1.000000e+00 : f32
    %464 = vector.broadcast %cst_126 : f32 to vector<2x32xf32>
    %465 = arith.addf %464, %463 : vector<2x32xf32>
    %466 = arith.divf %464, %465 : vector<2x32xf32>
    %467 = vector.extract_strided_slice %447 {offsets = [0, 64], sizes = [2, 32], strides = [1, 1]} : vector<2x96xf32> to vector<2x32xf32>
    %468 = vector.extract_strided_slice %450 {offsets = [0, 64], sizes = [2, 32], strides = [1, 1]} : vector<2x96xf32> to vector<2x32xf32>
    %469 = arith.mulf %458, %468 : vector<2x32xf32>
    %470 = arith.addf %467, %469 : vector<2x32xf32>
    %471 = math.tanh %470 : vector<2x32xf32>
    %cst_127 = arith.constant 1.000000e+00 : f32
    %472 = vector.broadcast %cst_127 : f32 to vector<2x32xf32>
    %473 = arith.subf %472, %466 : vector<2x32xf32>
    %474 = arith.mulf %473, %471 : vector<2x32xf32>
    %475 = arith.mulf %466, %414 : vector<2x32xf32>
    %476 = arith.addf %474, %475 : vector<2x32xf32>
    %c12_128 = arith.constant 12 : index
    %c0_129 = arith.constant 0 : index
    %477 = vector.load %arg10[%c12_128, %c0_129] : memref<16x64xf32, #tpu.memory_space<vmem>>, vector<2x32xf32>
    tpu.vector_store %arg10[%c12_128, %c0_129], %446 {strides = array<i32>} : memref<16x64xf32, #tpu.memory_space<vmem>>, vector<2x32xf32>,
    %c2_130 = arith.constant 2 : index
    %c32_131 = arith.constant 32 : index
    %478 = vector.load %arg10[%c2_130, %c32_131] : memref<16x64xf32, #tpu.memory_space<vmem>>, vector<2x32xf32>
    tpu.vector_store %arg10[%c2_130, %c32_131], %476 {strides = array<i32>} : memref<16x64xf32, #tpu.memory_space<vmem>>, vector<2x32xf32>,
    %c14_132 = arith.constant 14 : index
    %c0_133 = arith.constant 0 : index
    %479 = vector.load %arg11[%c14_132, %c0_133] : memref<16x192xf32, #tpu.memory_space<vmem>>, vector<2x96xf32>
    %cst_134 = arith.constant dense<0.000000e+00> : vector<2x96xf32>
    %480 = tpu.matmul %446, %39, %cst_134 {dimension_numbers = #tpu.dot_dimension_numbers<[1], [0], [0], [1], [0, 0, 1, 1], [], []>} : vector<2x32xf32>, vector<32x96xf32>, vector<2x96xf32> -> vector<2x96xf32>
    %481 = vector.broadcast %41 : vector<1x96xf32> to vector<2x96xf32>
    %482 = arith.addf %480, %481 : vector<2x96xf32>
    %483 = vector.extract_strided_slice %479 {offsets = [0, 0], sizes = [2, 32], strides = [1, 1]} : vector<2x96xf32> to vector<2x32xf32>
    %484 = vector.extract_strided_slice %482 {offsets = [0, 0], sizes = [2, 32], strides = [1, 1]} : vector<2x96xf32> to vector<2x32xf32>
    %485 = arith.addf %483, %484 : vector<2x32xf32>
    %486 = arith.negf %485 : vector<2x32xf32>
    %487 = math.exp %486 : vector<2x32xf32>
    %cst_135 = arith.constant 1.000000e+00 : f32
    %488 = vector.broadcast %cst_135 : f32 to vector<2x32xf32>
    %489 = arith.addf %488, %487 : vector<2x32xf32>
    %490 = arith.divf %488, %489 : vector<2x32xf32>
    %491 = vector.extract_strided_slice %479 {offsets = [0, 32], sizes = [2, 32], strides = [1, 1]} : vector<2x96xf32> to vector<2x32xf32>
    %492 = vector.extract_strided_slice %482 {offsets = [0, 32], sizes = [2, 32], strides = [1, 1]} : vector<2x96xf32> to vector<2x32xf32>
    %493 = arith.addf %491, %492 : vector<2x32xf32>
    %494 = arith.negf %493 : vector<2x32xf32>
    %495 = math.exp %494 : vector<2x32xf32>
    %cst_136 = arith.constant 1.000000e+00 : f32
    %496 = vector.broadcast %cst_136 : f32 to vector<2x32xf32>
    %497 = arith.addf %496, %495 : vector<2x32xf32>
    %498 = arith.divf %496, %497 : vector<2x32xf32>
    %499 = vector.extract_strided_slice %479 {offsets = [0, 64], sizes = [2, 32], strides = [1, 1]} : vector<2x96xf32> to vector<2x32xf32>
    %500 = vector.extract_strided_slice %482 {offsets = [0, 64], sizes = [2, 32], strides = [1, 1]} : vector<2x96xf32> to vector<2x32xf32>
    %501 = arith.mulf %490, %500 : vector<2x32xf32>
    %502 = arith.addf %499, %501 : vector<2x32xf32>
    %503 = math.tanh %502 : vector<2x32xf32>
    %cst_137 = arith.constant 1.000000e+00 : f32
    %504 = vector.broadcast %cst_137 : f32 to vector<2x32xf32>
    %505 = arith.subf %504, %498 : vector<2x32xf32>
    %506 = arith.mulf %505, %503 : vector<2x32xf32>
    %507 = arith.mulf %498, %446 : vector<2x32xf32>
    %508 = arith.addf %506, %507 : vector<2x32xf32>
    %c0_138 = arith.constant 0 : index
    %c96_139 = arith.constant 96 : index
    %509 = vector.load %arg11[%c0_138, %c96_139] : memref<16x192xf32, #tpu.memory_space<vmem>>, vector<2x96xf32>
    %cst_140 = arith.constant dense<0.000000e+00> : vector<2x96xf32>
    %510 = tpu.matmul %476, %40, %cst_140 {dimension_numbers = #tpu.dot_dimension_numbers<[1], [0], [0], [1], [0, 0, 1, 1], [], []>} : vector<2x32xf32>, vector<32x96xf32>, vector<2x96xf32> -> vector<2x96xf32>
    %511 = vector.broadcast %42 : vector<1x96xf32> to vector<2x96xf32>
    %512 = arith.addf %510, %511 : vector<2x96xf32>
    %513 = vector.extract_strided_slice %509 {offsets = [0, 0], sizes = [2, 32], strides = [1, 1]} : vector<2x96xf32> to vector<2x32xf32>
    %514 = vector.extract_strided_slice %512 {offsets = [0, 0], sizes = [2, 32], strides = [1, 1]} : vector<2x96xf32> to vector<2x32xf32>
    %515 = arith.addf %513, %514 : vector<2x32xf32>
    %516 = arith.negf %515 : vector<2x32xf32>
    %517 = math.exp %516 : vector<2x32xf32>
    %cst_141 = arith.constant 1.000000e+00 : f32
    %518 = vector.broadcast %cst_141 : f32 to vector<2x32xf32>
    %519 = arith.addf %518, %517 : vector<2x32xf32>
    %520 = arith.divf %518, %519 : vector<2x32xf32>
    %521 = vector.extract_strided_slice %509 {offsets = [0, 32], sizes = [2, 32], strides = [1, 1]} : vector<2x96xf32> to vector<2x32xf32>
    %522 = vector.extract_strided_slice %512 {offsets = [0, 32], sizes = [2, 32], strides = [1, 1]} : vector<2x96xf32> to vector<2x32xf32>
    %523 = arith.addf %521, %522 : vector<2x32xf32>
    %524 = arith.negf %523 : vector<2x32xf32>
    %525 = math.exp %524 : vector<2x32xf32>
    %cst_142 = arith.constant 1.000000e+00 : f32
    %526 = vector.broadcast %cst_142 : f32 to vector<2x32xf32>
    %527 = arith.addf %526, %525 : vector<2x32xf32>
    %528 = arith.divf %526, %527 : vector<2x32xf32>
    %529 = vector.extract_strided_slice %509 {offsets = [0, 64], sizes = [2, 32], strides = [1, 1]} : vector<2x96xf32> to vector<2x32xf32>
    %530 = vector.extract_strided_slice %512 {offsets = [0, 64], sizes = [2, 32], strides = [1, 1]} : vector<2x96xf32> to vector<2x32xf32>
    %531 = arith.mulf %520, %530 : vector<2x32xf32>
    %532 = arith.addf %529, %531 : vector<2x32xf32>
    %533 = math.tanh %532 : vector<2x32xf32>
    %cst_143 = arith.constant 1.000000e+00 : f32
    %534 = vector.broadcast %cst_143 : f32 to vector<2x32xf32>
    %535 = arith.subf %534, %528 : vector<2x32xf32>
    %536 = arith.mulf %535, %533 : vector<2x32xf32>
    %537 = arith.mulf %528, %476 : vector<2x32xf32>
    %538 = arith.addf %536, %537 : vector<2x32xf32>
    %c14_144 = arith.constant 14 : index
    %c0_145 = arith.constant 0 : index
    %539 = vector.load %arg10[%c14_144, %c0_145] : memref<16x64xf32, #tpu.memory_space<vmem>>, vector<2x32xf32>
    tpu.vector_store %arg10[%c14_144, %c0_145], %508 {strides = array<i32>} : memref<16x64xf32, #tpu.memory_space<vmem>>, vector<2x32xf32>,
    %c0_146 = arith.constant 0 : index
    %c32_147 = arith.constant 32 : index
    %540 = vector.load %arg10[%c0_146, %c32_147] : memref<16x64xf32, #tpu.memory_space<vmem>>, vector<2x32xf32>
    tpu.vector_store %arg10[%c0_146, %c32_147], %538 {strides = array<i32>} : memref<16x64xf32, #tpu.memory_space<vmem>>, vector<2x32xf32>,
    return
  }
  func.func @transform_0(%arg0: i32) -> (i32, i32) {
    %c0_i32 = arith.constant 0 : i32
    %c0_i32_0 = arith.constant 0 : i32
    %c0_i32_1 = arith.constant 0 : i32
    return %c0_i32, %c0_i32_0 : i32, i32
  }
  func.func @transform_1(%arg0: i32) -> (i32, i32) {
    %c0_i32 = arith.constant 0 : i32
    %c0_i32_0 = arith.constant 0 : i32
    %c0_i32_1 = arith.constant 0 : i32
    return %c0_i32, %c0_i32_0 : i32, i32
  }
  func.func @transform_2(%arg0: i32) -> (i32, i32) {
    %c0_i32 = arith.constant 0 : i32
    %c0_i32_0 = arith.constant 0 : i32
    %c0_i32_1 = arith.constant 0 : i32
    return %c0_i32, %c0_i32_0 : i32, i32
  }
  func.func @transform_3(%arg0: i32) -> (i32, i32) {
    %c0_i32 = arith.constant 0 : i32
    %c0_i32_0 = arith.constant 0 : i32
    %c0_i32_1 = arith.constant 0 : i32
    return %c0_i32, %c0_i32_0 : i32, i32
  }
  func.func @transform_4(%arg0: i32) -> (i32, i32) {
    %c0_i32 = arith.constant 0 : i32
    %c0_i32_0 = arith.constant 0 : i32
    %c0_i32_1 = arith.constant 0 : i32
    return %c0_i32, %c0_i32_0 : i32, i32
  }
  func.func @transform_5(%arg0: i32) -> (i32, i32) {
    %c0_i32 = arith.constant 0 : i32
    %c0_i32_0 = arith.constant 0 : i32
    %c0_i32_1 = arith.constant 0 : i32
    return %c0_i32, %c0_i32_0 : i32, i32
  }
  func.func @transform_6(%arg0: i32) -> (i32, i32) {
    %c0_i32 = arith.constant 0 : i32
    %c0_i32_0 = arith.constant 0 : i32
    %c0_i32_1 = arith.constant 0 : i32
    return %c0_i32, %c0_i32_0 : i32, i32
  }
  func.func @transform_7(%arg0: i32) -> (i32, i32) {
    %c0_i32 = arith.constant 0 : i32
    %c0_i32_0 = arith.constant 0 : i32
    %c0_i32_1 = arith.constant 0 : i32
    return %c0_i32, %c0_i32_0 : i32, i32
  }
  func.func @transform_8(%arg0: i32) -> (i32, i32) {
    %c0_i32 = arith.constant 0 : i32
    %c0_i32_0 = arith.constant 0 : i32
    %c0_i32_1 = arith.constant 0 : i32
    return %c0_i32, %c0_i32_0 : i32, i32
  }
  func.func @transform_9(%arg0: i32) -> (i32, i32) {
    %c0_i32 = arith.constant 0 : i32
    %c0_i32_0 = arith.constant 0 : i32
    %c0_i32_1 = arith.constant 0 : i32
    return %c0_i32, %c0_i32_0 : i32, i32
  }
}

</mosaic_0001>

<llo_original>
// kernel: tpu_custom_call.1
$region0: #{tpu_custom_call.1}
  #allocation0 [shape = 'u32[]', space=smem, size = 0x4, offset = 0x4, fixed_abs, tag = 'smem constant byte address 0x4 - core index']
  #allocation1 [shape = 'u32[72,128]{1,0:T(1,128)}', space=vmem, size = 0x9000, scoped, tag = 'internal scratch']
  #allocation2 [shape = 'f32[16,192]{1,0:T(8,128)}', space=vmem, size = 0x4000, scoped, tag = 'scratch operand']
  %s0 = inlined_call_operand.hbm [shape: f32[16,32], index: 0, kind: input, shape index: {}]
  %s1 = inlined_call_operand.hbm [shape: f32[1,32], index: 1, kind: input, shape index: {}]
  %s2 = inlined_call_operand.vmem [shape: f32[1,32], index: 2, kind: input, shape index: {}]
  %s3 = inlined_call_operand.hbm [shape: f32[32,192], index: 3, kind: input, shape index: {}]
  %s4 = inlined_call_operand.vmem [shape: f32[1,192], index: 4, kind: input, shape index: {}]
  %s5 = inlined_call_operand.hbm [shape: f32[32,96], index: 5, kind: input, shape index: {}]
  %s6 = inlined_call_operand.hbm [shape: f32[32,96], index: 6, kind: input, shape index: {}]
  %s7 = inlined_call_operand.vmem [shape: f32[1,96], index: 7, kind: input, shape index: {}]
  %s8 = inlined_call_operand.vmem [shape: f32[1,96], index: 8, kind: input, shape index: {}]
  %s9 = inlined_call_operand.hbm [shape: f32[16,64], index: 9, kind: output, shape index: {}]
  %s10 = sld [smem:[#allocation0]]
  $region66: #{tpu_custom_call.1} parent=0
    _
  %s12 = ssub.s32 1, %s10
  %s13 = scalar_select 0, %s12, %s10
  $region1: #{tpu_custom_call.1} parent=0
    #allocation3 [shape = 'u8[8192]{0}', space=vmem, size = 0x2000, scoped, tag = 'input window, operand 0, single buffered']
    #allocation4 [shape = 's32[1]{0}', space=sflag, size = 0x4, scoped, tag = 'scoped memory for tpu_custom_call.1']
    #allocation5 [shape = 's32[1]{0}', space=sflag, size = 0x4, scoped, tag = 'scoped memory for tpu_custom_call.1']
    #allocation6 [shape = 'u8[512]{0}', space=vmem, size = 0x400, scoped, tag = 'input window, operand 1, single buffered']
    #allocation7 [shape = 's32[1]{0}', space=sflag, size = 0x4, scoped, tag = 'scoped memory for tpu_custom_call.1']
    #allocation8 [shape = 'u8[32768]{0}', space=vmem, size = 0x8000, scoped, tag = 'input window, operand 3, single buffered']
    #allocation9 [shape = 'u8[16384]{0}', space=vmem, size = 0x4000, scoped, tag = 'input window, operand 5, single buffered']
    #allocation10 [shape = 's32[1]{0}', space=sflag, size = 0x4, scoped, tag = 'scoped memory for tpu_custom_call.1']
    #allocation11 [shape = 'u8[16384]{0}', space=vmem, size = 0x4000, scoped, tag = 'input window, operand 6, single buffered']
    #allocation12 [shape = 'u8[8192]{0}', space=vmem, size = 0x2000, scoped, tag = 'output window, operand 0, single buffered']
    %14 = vsyncpa [#allocation4], 0
    %15 = vsyncpa [#allocation7], 0
    %16 = vsyncpa [#allocation10], 0
    %17 = vsyncpa [#allocation5], 0
    // Predicated region
    $region2: #{tpu_custom_call.1} parent=1 // pred_check
      _
    $region3: #{tpu_custom_call.1} parent=1 // pred_check_branch
      %19 = sbr.rel (0) target = $region5
    $region4: #{tpu_custom_call.1} parent=1 // pred_region
      %21 = vsyncadd [#allocation4], 0
      %s22 = sshll.u32 %s0, 4
      %s23 = int_to_ptr.hbm [resolvable:$true] %s22
      %s24 = sshll.u32 [#allocation3], 4
      %s25 = int_to_ptr.vmem [resolvable:$true] %s24
      %30 = dma.hbm_to_vmem [thread:$0]  %s23, 256, %s25, [#allocation4], 128, 128, 8
    $region5: #{tpu_custom_call.1} parent=1 // pred_fallthru
      _
    // Predicated region
    $region6: #{tpu_custom_call.1} parent=1 // pred_check
      _
    $region7: #{tpu_custom_call.1} parent=1 // pred_check_branch
      %32 = sbr.rel (0) target = $region9
    $region8: #{tpu_custom_call.1} parent=1 // pred_region
      %34 = vsyncadd [#allocation7], 0
      %s36 = sshll.u32 %s1, 4
      %s37 = int_to_ptr.hbm [resolvable:$true] %s36
      %s38 = sshll.u32 [#allocation6], 4
      %s39 = int_to_ptr.vmem [resolvable:$true] %s38
      %41 = dma.hbm_to_vmem [thread:$0]  %s37, 16, %s39, [#allocation7]
    $region9: #{tpu_custom_call.1} parent=1 // pred_fallthru
      _
    // Predicated region
    $region10: #{tpu_custom_call.1} parent=1 // pred_check
      _
    $region11: #{tpu_custom_call.1} parent=1 // pred_check_branch
      %43 = sbr.rel (0) target = $region13
    $region12: #{tpu_custom_call.1} parent=1 // pred_region
      _
    $region13: #{tpu_custom_call.1} parent=1 // pred_fallthru
      _
    // Predicated region
    $region14: #{tpu_custom_call.1} parent=1 // pred_check
      _
    $region15: #{tpu_custom_call.1} parent=1 // pred_check_branch
      %45 = sbr.rel (0) target = $region17
    $region16: #{tpu_custom_call.1} parent=1 // pred_region
      %47 = vsyncadd [#allocation7], 0
      %s48 = sshll.u32 %s3, 4
      %s49 = int_to_ptr.hbm [resolvable:$true] %s48
      %s50 = sshll.u32 [#allocation8], 4
      %s51 = int_to_ptr.vmem [resolvable:$true] %s50
      %56 = dma.hbm_to_vmem [thread:$0]  %s49, 1024, %s51, [#allocation7], 256, 256, 16
    $region17: #{tpu_custom_call.1} parent=1 // pred_fallthru
      _
    // Predicated region
    $region18: #{tpu_custom_call.1} parent=1 // pred_check
      _
    $region19: #{tpu_custom_call.1} parent=1 // pred_check_branch
      %58 = sbr.rel (0) target = $region21
    $region20: #{tpu_custom_call.1} parent=1 // pred_region
      _
    $region21: #{tpu_custom_call.1} parent=1 // pred_fallthru
      _
    // Predicated region
    $region22: #{tpu_custom_call.1} parent=1 // pred_check
      _
    $region23: #{tpu_custom_call.1} parent=1 // pred_check_branch
      %60 = sbr.rel (0) target = $region25
    $region24: #{tpu_custom_call.1} parent=1 // pred_region
      %62 = vsyncadd [#allocation10], 0
      %s63 = sshll.u32 %s5, 4
      %s64 = int_to_ptr.hbm [resolvable:$true] %s63
      %s65 = sshll.u32 [#allocation9], 4
      %s66 = int_to_ptr.vmem [resolvable:$true] %s65
      %71 = dma.hbm_to_vmem [thread:$0]  %s64, 512, %s66, [#allocation10], 128, 128, 8
    $region25: #{tpu_custom_call.1} parent=1 // pred_fallthru
      _
    // Predicated region
    $region26: #{tpu_custom_call.1} parent=1 // pred_check
      _
    $region27: #{tpu_custom_call.1} parent=1 // pred_check_branch
      %73 = sbr.rel (0) target = $region29
    $region28: #{tpu_custom_call.1} parent=1 // pred_region
      %75 = vsyncadd [#allocation10], 0
      %s76 = sshll.u32 %s6, 4
      %s77 = int_to_ptr.hbm [resolvable:$true] %s76
      %s78 = sshll.u32 [#allocation11], 4
      %s79 = int_to_ptr.vmem [resolvable:$true] %s78
      %84 = dma.hbm_to_vmem [thread:$0]  %s77, 512, %s79, [#allocation10], 128, 128, 8
    $region29: #{tpu_custom_call.1} parent=1 // pred_fallthru
      _
    // Predicated region
    $region30: #{tpu_custom_call.1} parent=1 // pred_check
      _
    $region31: #{tpu_custom_call.1} parent=1 // pred_check_branch
      %86 = sbr.rel (0) target = $region33
    $region32: #{tpu_custom_call.1} parent=1 // pred_region
      _
    $region33: #{tpu_custom_call.1} parent=1 // pred_fallthru
      _
    // Predicated region
    $region34: #{tpu_custom_call.1} parent=1 // pred_check
      _
    $region35: #{tpu_custom_call.1} parent=1 // pred_check_branch
      %88 = sbr.rel (0) target = $region37
    $region36: #{tpu_custom_call.1} parent=1 // pred_region
      _
    $region37: #{tpu_custom_call.1} parent=1 // pred_fallthru
      _
    // Predicated region
    $region38: #{tpu_custom_call.1} parent=1 // pred_check
      _
    $region39: #{tpu_custom_call.1} parent=1 // pred_check_branch
      %90 = sbr.rel (0) target = $region41
    $region40: #{tpu_custom_call.1} parent=1 // pred_region
      %92 = dma.done [#allocation4], 256
    $region41: #{tpu_custom_call.1} parent=1 // pred_fallthru
      _
    // Predicated region
    $region42: #{tpu_custom_call.1} parent=1 // pred_check
      _
    $region43: #{tpu_custom_call.1} parent=1 // pred_check_branch
      %94 = sbr.rel (0) target = $region45
    $region44: #{tpu_custom_call.1} parent=1 // pred_region
      %96 = dma.done [#allocation7], 16
    $region45: #{tpu_custom_call.1} parent=1 // pred_fallthru
      _
    // Predicated region
    $region46: #{tpu_custom_call.1} parent=1 // pred_check
      _
    $region47: #{tpu_custom_call.1} parent=1 // pred_check_branch
      %98 = sbr.rel (0) target = $region49
    $region48: #{tpu_custom_call.1} parent=1 // pred_region
      %100 = dma.done [#allocation7], 1024
    $region49: #{tpu_custom_call.1} parent=1 // pred_fallthru
      _
    // Predicated region
    $region50: #{tpu_custom_call.1} parent=1 // pred_check
      _
    $region51: #{tpu_custom_call.1} parent=1 // pred_check_branch
      %102 = sbr.rel (0) target = $region53
    $region52: #{tpu_custom_call.1} parent=1 // pred_region
      %104 = dma.done [#allocation10], 512
    $region53: #{tpu_custom_call.1} parent=1 // pred_fallthru
      _
    // Predicated region
    $region54: #{tpu_custom_call.1} parent=1 // pred_check
      _
    $region55: #{tpu_custom_call.1} parent=1 // pred_check_branch
      %106 = sbr.rel (0) target = $region57
    $region56: #{tpu_custom_call.1} parent=1 // pred_region
      %108 = dma.done [#allocation10], 512
    $region57: #{tpu_custom_call.1} parent=1 // pred_fallthru
      _
    %v109 = vld [vmem:[#allocation3] sm:$0xff]
    %v110 = vld [vmem:[#allocation3 + $0x8] sm:$0xff]
    %vm111 = vcmask 261120
    %v112 = vsel %vm111, %v109, 0.0
    %113 = vadd.xlane.f32.xlu0 %v112
    %v114 = vpop.xlane.xlu0 %113
    %v115 = vsel %vm111, %v110, 0.0
    %116 = vadd.xlane.f32.xlu0 %v115
    %v117 = vpop.xlane.xlu0 %116
    %v118 = vrcp.pop 32.0
    %v119 = vmul.f32 32.0, %v118
    %v120 = vsub.f32 1.0, %v119
    %v121 = vmul.f32 %v118, %v120
    %v122 = vadd.f32 %v118, %v121
    %vm123 = vweird.f32 %v118
    %v124 = vsel %vm123, %v118, %v122
    %v125 = vmul.f32 %v114, %v124
    %v126 = vmul.f32 %v117, %v124
    %v127 = vsub.f32 %v109, %v125
    %v128 = vsub.f32 %v110, %v126
    %v129 = vmul.f32 %v127, %v127
    %v130 = vmul.f32 %v128, %v128
    %v131 = vsel %vm111, %v129, 0.0
    %132 = vadd.xlane.f32.xlu0 %v131
    %v133 = vpop.xlane.xlu0 %132
    %v134 = vsel %vm111, %v130, 0.0
    %135 = vadd.xlane.f32.xlu0 %v134
    %v136 = vpop.xlane.xlu0 %135
    %v137 = vmul.f32 %v133, %v124
    %v138 = vmul.f32 %v136, %v124
    %v139 = vadd.f32 %v137, 1e-05
    %v140 = vadd.f32 %v138, 1e-05
    %v141 = vrsqrt.pop %v139
    %v142 = vmul.f32 %v141, %v139
    %v143 = vmul.f32 %v142, %v141
    %v144 = vmul.f32 0.5, %v143
    %v145 = vsub.f32 1.5, %v144
    %v146 = vmul.f32 %v141, %v145
    %vm147 = vweird.f32 %v139
    %vm148 = vweird.f32 %v141
    %vm149 = vmor %vm147, %vm148
    %v150 = vsel %vm149, %v141, %v146
    %v151 = vrsqrt.pop %v140
    %v152 = vmul.f32 %v151, %v140
    %v153 = vmul.f32 %v152, %v151
    %v154 = vmul.f32 0.5, %v153
    %v155 = vsub.f32 1.5, %v154
    %v156 = vmul.f32 %v151, %v155
    %vm157 = vweird.f32 %v140
    %vm158 = vweird.f32 %v151
    %vm159 = vmor %vm157, %vm158
    %v160 = vsel %vm159, %v151, %v156
    %v161 = vmul.f32 %v127, %v150
    %v162 = vmul.f32 %v128, %v160
    %v163 = vld [vmem:[#allocation6] sm:$0x1]
    %v165 = vperm.slane %v163, 0
    %v167 = vmul.f32 %v161, %v165
    %v168 = vmul.f32 %v162, %v165
    %v169 = vld [vmem:[%s2] sm:$0x1]
    %v171 = vperm.slane %v169, 0
    %v173 = vadd.f32 %v167, %v171
    %v174 = vadd.f32 %v168, %v171
    %v175 = vmul.f32 %v173, 0.5
    %v176 = vmul.f32 %v174, 0.5
    %v177 = vmul.f32 %v173, 0.70710677
    %v178 = vmul.f32 %v174, 0.70710677
    %v179 = vmul.f32 %v177, %v177
    %v180 = vmin.f32 16.0, %v179
    %v181 = vmul.f32 %v180, 2.1237322e-06
    %v182 = vadd.f32 %v181, 0.00028619796
    %v183 = vmul.f32 %v180, %v182
    %v184 = vadd.f32 %v183, 0.0036580483
    %v185 = vmul.f32 %v180, %v184
    %v186 = vadd.f32 %v185, 0.05243302
    %v187 = vmul.f32 %v180, %v186
    %v188 = vadd.f32 %v187, 0.18741608
    %v189 = vmul.f32 %v180, %v188
    %v190 = vadd.f32 %v189, 1.1283791
    %v191 = vmul.f32 %v177, %v190
    %v192 = vmul.f32 %v180, 3.8918573e-05
    %v193 = vadd.f32 %v192, 0.001143296
    %v194 = vmul.f32 %v180, %v193
    %v195 = vadd.f32 %v194, 0.014752088
    %v196 = vmul.f32 %v180, %v195
    %v197 = vadd.f32 %v196, 0.112945676
    %v198 = vmul.f32 %v180, %v197
    %v199 = vadd.f32 %v198, 0.4994258
    %v200 = vmul.f32 %v180, %v199
    %v201 = vadd.f32 %v200, 1.0
    %v202 = vrcp.pop %v201
    %v203 = vmul.f32 %v201, %v202
    %v204 = vsub.f32 1.0, %v203
    %v205 = vmul.f32 %v202, %v204
    %v206 = vadd.f32 %v202, %v205
    %vm207 = vweird.f32 %v201
    %vm208 = vweird.f32 %v202
    %vm209 = vmor %vm207, %vm208
    %v210 = vsel %vm209, %v202, %v206
    %v211 = vand.u32 2147483647, %v201
    %vm212 = vcmp.eq.f32.partialorder %v211, 8.507059e+37
    %v213 = vand.u32 %v201, 2147483648
    %v214 = vor.u32 1.1754944e-38, %v213
    %v215 = vsel %vm212, %v214, %v210
    %v216 = vmul.f32 %v191, %v215
    %v217 = vmin.f32 %v216, 1.0
    %v218 = vmax.f32 %v217, -1.0
    %v219 = vmul.f32 %v178, %v178
    %v220 = vmin.f32 16.0, %v219
    %v221 = vmul.f32 %v220, 2.1237322e-06
    %v222 = vadd.f32 %v221, 0.00028619796
    %v223 = vmul.f32 %v220, %v222
    %v224 = vadd.f32 %v223, 0.0036580483
    %v225 = vmul.f32 %v220, %v224
    %v226 = vadd.f32 %v225, 0.05243302
    %v227 = vmul.f32 %v220, %v226
    %v228 = vadd.f32 %v227, 0.18741608
    %v229 = vmul.f32 %v220, %v228
    %v230 = vadd.f32 %v229, 1.1283791
    %v231 = vmul.f32 %v178, %v230
    %v232 = vmul.f32 %v220, 3.8918573e-05
    %v233 = vadd.f32 %v232, 0.001143296
    %v234 = vmul.f32 %v220, %v233
    %v235 = vadd.f32 %v234, 0.014752088
    %v236 = vmul.f32 %v220, %v235
    %v237 = vadd.f32 %v236, 0.112945676
    %v238 = vmul.f32 %v220, %v237
    %v239 = vadd.f32 %v238, 0.4994258
    %v240 = vmul.f32 %v220, %v239
    %v241 = vadd.f32 %v240, 1.0
    %v242 = vrcp.pop %v241
    %v243 = vmul.f32 %v241, %v242
    %v244 = vsub.f32 1.0, %v243
    %v245 = vmul.f32 %v242, %v244
    %v246 = vadd.f32 %v242, %v245
    %vm247 = vweird.f32 %v241
    %vm248 = vweird.f32 %v242
    %vm249 = vmor %vm247, %vm248
    %v250 = vsel %vm249, %v242, %v246
    %v251 = vand.u32 2147483647, %v241
    %vm252 = vcmp.eq.f32.partialorder %v251, 8.507059e+37
    %v253 = vand.u32 %v241, 2147483648
    %v254 = vor.u32 1.1754944e-38, %v253
    %v255 = vsel %vm252, %v254, %v250
    %v256 = vmul.f32 %v231, %v255
    %v257 = vmin.f32 %v256, 1.0
    %v258 = vmax.f32 %v257, -1.0
    %v259 = vadd.f32 %v218, 1.0
    %v260 = vadd.f32 %v258, 1.0
    %v261 = vmul.f32 %v175, %v259
    %v262 = vmul.f32 %v176, %v260
    %v263 = vld [vmem:[#allocation8] sm:$0xff]
    %v264 = vld [vmem:[#allocation8 + $0x8] sm:$0xff]
    %v265 = vld [vmem:[#allocation8 + $0x10] sm:$0xff]
    %v266 = vld [vmem:[#allocation8 + $0x18] sm:$0xff]
    %v267 = vld [vmem:[#allocation8 + $0x20] sm:$0xff]
    %v268 = vld [vmem:[#allocation8 + $0x28] sm:$0xff]
    %v269 = vld [vmem:[#allocation8 + $0x30] sm:$0xff]
    %v270 = vld [vmem:[#allocation8 + $0x38] sm:$0xff]
    %v271 = vld [vmem:[%s4] sm:$0x3]
    %v273 = vperm.slane %v271, 0
    %v274 = vperm.slane %v271, 1
    %v278 = vsel %vm111, %v261, 0
    %v281 = vsel %vm111, %v262, 0
    %283 = vmatpush.msra.mxu0 0.0
    %284 = vmatpush.msra.mxu0 0.0
    %285 = vmatpush.msra.mxu0 0.0
    %286 = vmatpush.msra.mxu0 0.0
    %287 = vmatpush.msra.mxu0 0.0
    %288 = vmatpush.msra.mxu0 0.0
    %289 = vmatpush.msra.mxu0 0.0
    %290 = vmatpush.msra.mxu0 0.0
    %291 = vmatpush.msra.mxu0 0.0
    %292 = vmatpush.msra.mxu0 0.0
    %293 = vmatpush.msra.mxu0 0.0
    %294 = vmatpush.msra.mxu0 0.0
    %295 = vmatpush.msra.mxu0 %v269
    %296 = vmatpush.msra.mxu0 %v267
    %297 = vmatpush.msra.mxu0 %v265
    %298 = vmatpush.msra.mxu0 %v263
    %299 = vmatmul.f32.gmra.mxu0 %v278
    %v300 = vpop.f32.mrf.mxu0
    %v301 = vadd.f32 %v273, %v300
    %302 = vmatmul.f32.gmra.mxu0 %v281
    %v303 = vpop.f32.mrf.mxu0
    %v304 = vadd.f32 %v273, %v303
    %305 = vdwg.mxu0
    %306 = vmatpush.msra.mxu0 0.0
    %307 = vmatpush.msra.mxu0 0.0
    %308 = vmatpush.msra.mxu0 0.0
    %309 = vmatpush.msra.mxu0 0.0
    %310 = vmatpush.msra.mxu0 0.0
    %311 = vmatpush.msra.mxu0 0.0
    %312 = vmatpush.msra.mxu0 0.0
    %313 = vmatpush.msra.mxu0 0.0
    %314 = vmatpush.msra.mxu0 0.0
    %315 = vmatpush.msra.mxu0 0.0
    %316 = vmatpush.msra.mxu0 0.0
    %317 = vmatpush.msra.mxu0 0.0
    %318 = vmatpush.msra.mxu0 %v270
    %319 = vmatpush.msra.mxu0 %v268
    %320 = vmatpush.msra.mxu0 %v266
    %321 = vmatpush.msra.mxu0 %v264
    %322 = vmatmul.f32.gmra.mxu0 %v278
    %v323 = vpop.f32.mrf.mxu0
    %v324 = vadd.f32 %v274, %v323
    %325 = vmatmul.f32.gmra.mxu0 %v281
    %v326 = vpop.f32.mrf.mxu0
    %v327 = vadd.f32 %v274, %v326
    %328 = vdwg.mxu0
    %329 = vst [vmem:[#allocation2] sm:$0xff] %v301
    %vm330 = vcmask 523264
    %331 = vst.msk [vmem:[#allocation2 + $0x8] sm:$0xff] %vm330, %v324
    %332 = vst [vmem:[#allocation2 + $0x10] sm:$0xff] %v304
    %333 = vst.msk [vmem:[#allocation2 + $0x18] sm:$0xff] %vm330, %v327
    %v334 = vld [vmem:[#allocation9] sm:$0xff]
    %v335 = vld [vmem:[#allocation9 + $0x8] sm:$0xff]
    %v336 = vld [vmem:[#allocation9 + $0x10] sm:$0xff]
    %v337 = vld [vmem:[#allocation9 + $0x18] sm:$0xff]
    %v338 = vld [vmem:[#allocation11] sm:$0xff]
    %v339 = vld [vmem:[#allocation11 + $0x8] sm:$0xff]
    %v340 = vld [vmem:[#allocation11 + $0x10] sm:$0xff]
    %v341 = vld [vmem:[#allocation11 + $0x18] sm:$0xff]
    %v342 = vld [vmem:[%s7] sm:$0x1]
    %v343 = vld [vmem:[%s8] sm:$0x1]
    %v344 = vld [vmem:[#allocation2] sm:$0x3]
    %v346 = vperm.slane %v342, 0
    %v349 = vsel %vm111, 0.0, 0
    %351 = vmatpush.msra.mxu0 0.0
    %352 = vmatpush.msra.mxu0 0.0
    %353 = vmatpush.msra.mxu0 0.0
    %354 = vmatpush.msra.mxu0 0.0
    %355 = vmatpush.msra.mxu0 0.0
    %356 = vmatpush.msra.mxu0 0.0
    %357 = vmatpush.msra.mxu0 0.0
    %358 = vmatpush.msra.mxu0 0.0
    %359 = vmatpush.msra.mxu0 0.0
    %360 = vmatpush.msra.mxu0 0.0
    %361 = vmatpush.msra.mxu0 0.0
    %362 = vmatpush.msra.mxu0 0.0
    %363 = vmatpush.msra.mxu0 %v337
    %364 = vmatpush.msra.mxu0 %v336
    %365 = vmatpush.msra.mxu0 %v335
    %366 = vmatpush.msra.mxu0 %v334
    %367 = vmatmul.f32.gmra.mxu0 %v349
    %v368 = vpop.f32.mrf.mxu0
    %v369 = vadd.f32 %v346, %v368
    %370 = vdwg.mxu0
    %v371 = vadd.f32 %v344, %v369
    %v372 = vxor.u32 %v371, 2147483648
    %v373 = vmul.f32 %v372, 1.442695
    %v374 = vpow.pop %v373
    %v375 = vadd.f32 %v374, 1.0
    %v376 = vrcp.pop %v375
    %v377 = vmul.f32 %v375, %v376
    %v378 = vsub.f32 1.0, %v377
    %v379 = vmul.f32 %v376, %v378
    %v380 = vadd.f32 %v376, %v379
    %vm381 = vweird.f32 %v375
    %vm382 = vweird.f32 %v376
    %vm383 = vmor %vm381, %vm382
    %v384 = vsel %vm383, %v376, %v380
    %v385 = vand.u32 2147483647, %v375
    %vm386 = vcmp.eq.f32.partialorder %v385, 8.507059e+37
    %v387 = vand.u32 %v375, 2147483648
    %v388 = vor.u32 1.1754944e-38, %v387
    %v389 = vsel %vm386, %v388, %v384
    %v390 = vmul.f32 1.0, %v389
    %392 = vrot.lane.b32.xlu0 %v369, 64
    %v393 = vpop.permute.xlu0 %392
    %v395 = vmul.f32 %v390, %v393
    %397 = vrot.lane.b32.xlu0 %v395, 64
    %v398 = vpop.permute.xlu0 %397
    %v400 = vadd.f32 %v344, %v398
    %v401 = vtanh.pop %v400
    %v402 = vsub.f32 1.0, %v390
    %404 = vrot.lane.b32.xlu0 %v401, 96
    %v405 = vpop.permute.xlu0 %404
    %v407 = vmul.f32 %v402, %v405
    %v408 = vmul.f32 %v390, 0.0
    %v409 = vadd.f32 %v407, %v408
    %v410 = vld [vmem:[#allocation2 + $0x10] sm:$0xc0]
    %v411 = vld [vmem:[#allocation2 + $0x18] sm:$0xc0]
    %v413 = vperm.slane %v343, 0
    %415 = vmatpush.msra.mxu0 0.0
    %416 = vmatpush.msra.mxu0 0.0
    %417 = vmatpush.msra.mxu0 0.0
    %418 = vmatpush.msra.mxu0 0.0
    %419 = vmatpush.msra.mxu0 0.0
    %420 = vmatpush.msra.mxu0 0.0
    %421 = vmatpush.msra.mxu0 0.0
    %422 = vmatpush.msra.mxu0 0.0
    %423 = vmatpush.msra.mxu0 0.0
    %424 = vmatpush.msra.mxu0 0.0
    %425 = vmatpush.msra.mxu0 0.0
    %426 = vmatpush.msra.mxu0 0.0
    %427 = vmatpush.msra.mxu0 %v341
    %428 = vmatpush.msra.mxu0 %v340
    %429 = vmatpush.msra.mxu0 %v339
    %430 = vmatpush.msra.mxu0 %v338
    %431 = vmatmul.f32.gmra.mxu0 %v349
    %v432 = vpop.f32.mrf.mxu0
    %v433 = vadd.f32 %v413, %v432
    %434 = vdwg.mxu0
    %v436 = vrot.slane %v433, 2
    %437 = vrot.lane.b32.xlu0 %v436, 96
    %v438 = vpop.permute.xlu0 %437
    %v440 = vadd.f32 %v410, %v438
    %v441 = vxor.u32 %v440, 2147483648
    %v442 = vmul.f32 %v441, 1.442695
    %v443 = vpow.pop %v442
    %v444 = vadd.f32 %v443, 1.0
    %v445 = vrcp.pop %v444
    %v446 = vmul.f32 %v444, %v445
    %v447 = vsub.f32 1.0, %v446
    %v448 = vmul.f32 %v445, %v447
    %v449 = vadd.f32 %v445, %v448
    %vm450 = vweird.f32 %v444
    %vm451 = vweird.f32 %v445
    %vm452 = vmor %vm450, %vm451
    %v453 = vsel %vm452, %v445, %v449
    %v454 = vand.u32 2147483647, %v444
    %vm455 = vcmp.eq.f32.partialorder %v454, 8.507059e+37
    %v456 = vand.u32 %v444, 2147483648
    %v457 = vor.u32 1.1754944e-38, %v456
    %v458 = vsel %vm455, %v457, %v453
    %v459 = vmul.f32 1.0, %v458
    %v460 = vadd.f32 %v411, %v438
    %v461 = vxor.u32 %v460, 2147483648
    %v462 = vmul.f32 %v461, 1.442695
    %v463 = vpow.pop %v462
    %v464 = vadd.f32 %v463, 1.0
    %v465 = vrcp.pop %v464
    %v466 = vmul.f32 %v464, %v465
    %v467 = vsub.f32 1.0, %v466
    %v468 = vmul.f32 %v465, %v467
    %v469 = vadd.f32 %v465, %v468
    %vm470 = vweird.f32 %v464
    %vm471 = vweird.f32 %v465
    %vm472 = vmor %vm470, %vm471
    %v473 = vsel %vm472, %v465, %v469
    %v474 = vand.u32 2147483647, %v464
    %vm475 = vcmp.eq.f32.partialorder %v474, 8.507059e+37
    %v476 = vand.u32 %v464, 2147483648
    %v477 = vor.u32 1.1754944e-38, %v476
    %v478 = vsel %vm475, %v477, %v473
    %v479 = vmul.f32 1.0, %v478
    %480 = vrot.lane.b32.xlu0 %v436, 32
    %v481 = vpop.permute.xlu0 %480
    %v483 = vmul.f32 %v459, %v481
    %485 = vrot.lane.b32.xlu0 %v483, 64
    %v486 = vpop.permute.xlu0 %485
    %v488 = vadd.f32 %v411, %v486
    %v489 = vtanh.pop %v488
    %v490 = vsub.f32 1.0, %v479
    %492 = vrot.lane.b32.xlu0 %v489, 96
    %v493 = vpop.permute.xlu0 %492
    %v495 = vmul.f32 %v490, %v493
    %v496 = vmul.f32 %v479, 0.0
    %v497 = vadd.f32 %v495, %v496
    %499 = vrot.lane.b32.xlu0 %v409, 96
    %v500 = vpop.permute.xlu0 %499
    %vm502 = vcmask 254976
    %503 = vst.msk [vmem:[#allocation12] sm:$0x3] %vm502, %v500
    %505 = vrot.lane.b32.xlu0 %v497, 32
    %v506 = vpop.permute.xlu0 %505
    %vm508 = vcmask 523526
    %509 = vst.msk [vmem:[#allocation12 + $0x8] sm:$0xc0] %vm508, %v506
    %v510 = vld [vmem:[#allocation2] sm:$0xc]
    %v511 = vsel %vm111, %v500, 0
    %513 = vmatpush.msra.mxu0 0.0
    %514 = vmatpush.msra.mxu0 0.0
    %515 = vmatpush.msra.mxu0 0.0
    %516 = vmatpush.msra.mxu0 0.0
    %517 = vmatpush.msra.mxu0 0.0
    %518 = vmatpush.msra.mxu0 0.0
    %519 = vmatpush.msra.mxu0 0.0
    %520 = vmatpush.msra.mxu0 0.0
    %521 = vmatpush.msra.mxu0 0.0
    %522 = vmatpush.msra.mxu0 0.0
    %523 = vmatpush.msra.mxu0 0.0
    %524 = vmatpush.msra.mxu0 0.0
    %525 = vmatpush.msra.mxu0 %v337
    %526 = vmatpush.msra.mxu0 %v336
    %527 = vmatpush.msra.mxu0 %v335
    %528 = vmatpush.msra.mxu0 %v334
    %529 = vmatmul.f32.gmra.mxu0 %v511
    %v530 = vpop.f32.mrf.mxu0
    %v531 = vadd.f32 %v346, %v530
    %532 = vdwg.mxu0
    %v534 = vrot.slane %v531, 6
    %v536 = vadd.f32 %v510, %v534
    %v537 = vxor.u32 %v536, 2147483648
    %v538 = vmul.f32 %v537, 1.442695
    %v539 = vpow.pop %v538
    %v540 = vadd.f32 %v539, 1.0
    %v541 = vrcp.pop %v540
    %v542 = vmul.f32 %v540, %v541
    %v543 = vsub.f32 1.0, %v542
    %v544 = vmul.f32 %v541, %v543
    %v545 = vadd.f32 %v541, %v544
    %vm546 = vweird.f32 %v540
    %vm547 = vweird.f32 %v541
    %vm548 = vmor %vm546, %vm547
    %v549 = vsel %vm548, %v541, %v545
    %v550 = vand.u32 2147483647, %v540
    %vm551 = vcmp.eq.f32.partialorder %v550, 8.507059e+37
    %v552 = vand.u32 %v540, 2147483648
    %v553 = vor.u32 1.1754944e-38, %v552
    %v554 = vsel %vm551, %v553, %v549
    %v555 = vmul.f32 1.0, %v554
    %556 = vrot.lane.b32.xlu0 %v534, 64
    %v557 = vpop.permute.xlu0 %556
    %v559 = vmul.f32 %v555, %v557
    %561 = vrot.lane.b32.xlu0 %v559, 64
    %v562 = vpop.permute.xlu0 %561
    %v564 = vadd.f32 %v510, %v562
    %v565 = vtanh.pop %v564
    %v566 = vsub.f32 1.0, %v555
    %568 = vrot.lane.b32.xlu0 %v565, 96
    %v569 = vpop.permute.xlu0 %568
    %v571 = vmul.f32 %v566, %v569
    %v572 = vrot.slane %v409, 6
    %v574 = vmul.f32 %v555, %v572
    %v575 = vadd.f32 %v571, %v574
    %v576 = vld [vmem:[#allocation2 + $0x10] sm:$0x30]
    %v577 = vld [vmem:[#allocation2 + $0x18] sm:$0x30]
    %v578 = vrot.slane %v497, 6
    %v579 = vsel %vm111, %v578, 0
    %581 = vmatpush.msra.mxu0 0.0
    %582 = vmatpush.msra.mxu0 0.0
    %583 = vmatpush.msra.mxu0 0.0
    %584 = vmatpush.msra.mxu0 0.0
    %585 = vmatpush.msra.mxu0 0.0
    %586 = vmatpush.msra.mxu0 0.0
    %587 = vmatpush.msra.mxu0 0.0
    %588 = vmatpush.msra.mxu0 0.0
    %589 = vmatpush.msra.mxu0 0.0
    %590 = vmatpush.msra.mxu0 0.0
    %591 = vmatpush.msra.mxu0 0.0
    %592 = vmatpush.msra.mxu0 0.0
    %593 = vmatpush.msra.mxu0 %v341
    %594 = vmatpush.msra.mxu0 %v340
    %595 = vmatpush.msra.mxu0 %v339
    %596 = vmatpush.msra.mxu0 %v338
    %597 = vmatmul.f32.gmra.mxu0 %v579
    %v598 = vpop.f32.mrf.mxu0
    %v599 = vadd.f32 %v413, %v598
    %600 = vdwg.mxu0
    %v602 = vrot.slane %v599, 4
    %603 = vrot.lane.b32.xlu0 %v602, 96
    %v604 = vpop.permute.xlu0 %603
    %v606 = vadd.f32 %v576, %v604
    %v607 = vxor.u32 %v606, 2147483648
    %v608 = vmul.f32 %v607, 1.442695
    %v609 = vpow.pop %v608
    %v610 = vadd.f32 %v609, 1.0
    %v611 = vrcp.pop %v610
    %v612 = vmul.f32 %v610, %v611
    %v613 = vsub.f32 1.0, %v612
    %v614 = vmul.f32 %v611, %v613
    %v615 = vadd.f32 %v611, %v614
    %vm616 = vweird.f32 %v610
    %vm617 = vweird.f32 %v611
    %vm618 = vmor %vm616, %vm617
    %v619 = vsel %vm618, %v611, %v615
    %v620 = vand.u32 2147483647, %v610
    %vm621 = vcmp.eq.f32.partialorder %v620, 8.507059e+37
    %v622 = vand.u32 %v610, 2147483648
    %v623 = vor.u32 1.1754944e-38, %v622
    %v624 = vsel %vm621, %v623, %v619
    %v625 = vmul.f32 1.0, %v624
    %v626 = vadd.f32 %v577, %v604
    %v627 = vxor.u32 %v626, 2147483648
    %v628 = vmul.f32 %v627, 1.442695
    %v629 = vpow.pop %v628
    %v630 = vadd.f32 %v629, 1.0
    %v631 = vrcp.pop %v630
    %v632 = vmul.f32 %v630, %v631
    %v633 = vsub.f32 1.0, %v632
    %v634 = vmul.f32 %v631, %v633
    %v635 = vadd.f32 %v631, %v634
    %vm636 = vweird.f32 %v630
    %vm637 = vweird.f32 %v631
    %vm638 = vmor %vm636, %vm637
    %v639 = vsel %vm638, %v631, %v635
    %v640 = vand.u32 2147483647, %v630
    %vm641 = vcmp.eq.f32.partialorder %v640, 8.507059e+37
    %v642 = vand.u32 %v630, 2147483648
    %v643 = vor.u32 1.1754944e-38, %v642
    %v644 = vsel %vm641, %v643, %v639
    %v645 = vmul.f32 1.0, %v644
    %646 = vrot.lane.b32.xlu0 %v602, 32
    %v647 = vpop.permute.xlu0 %646
    %v649 = vmul.f32 %v625, %v647
    %651 = vrot.lane.b32.xlu0 %v649, 64
    %v652 = vpop.permute.xlu0 %651
    %v654 = vadd.f32 %v577, %v652
    %v655 = vtanh.pop %v654
    %v656 = vsub.f32 1.0, %v645
    %658 = vrot.lane.b32.xlu0 %v655, 96
    %v659 = vpop.permute.xlu0 %658
    %v661 = vmul.f32 %v656, %v659
    %v662 = vrot.slane %v497, 2
    %v664 = vmul.f32 %v645, %v662
    %v665 = vadd.f32 %v661, %v664
    %667 = vrot.lane.b32.xlu0 %v575, 96
    %v668 = vpop.permute.xlu0 %667
    %vm670 = vcmask 257026
    %671 = vst.msk [vmem:[#allocation12] sm:$0xc] %vm670, %v668
    %673 = vrot.lane.b32.xlu0 %v665, 32
    %v674 = vpop.permute.xlu0 %673
    %vm676 = vcmask 521476
    %677 = vst.msk [vmem:[#allocation12 + $0x8] sm:$0x30] %vm676, %v674
    %v678 = vld [vmem:[#allocation2] sm:$0x30]
    %v679 = vrot.slane %v575, 2
    %680 = vrot.lane.b32.xlu0 %v679, 96
    %v681 = vpop.permute.xlu0 %680
    %v682 = vsel %vm111, %v681, 0
    %684 = vmatpush.msra.mxu0 0.0
    %685 = vmatpush.msra.mxu0 0.0
    %686 = vmatpush.msra.mxu0 0.0
    %687 = vmatpush.msra.mxu0 0.0
    %688 = vmatpush.msra.mxu0 0.0
    %689 = vmatpush.msra.mxu0 0.0
    %690 = vmatpush.msra.mxu0 0.0
    %691 = vmatpush.msra.mxu0 0.0
    %692 = vmatpush.msra.mxu0 0.0
    %693 = vmatpush.msra.mxu0 0.0
    %694 = vmatpush.msra.mxu0 0.0
    %695 = vmatpush.msra.mxu0 0.0
    %696 = vmatpush.msra.mxu0 %v337
    %697 = vmatpush.msra.mxu0 %v336
    %698 = vmatpush.msra.mxu0 %v335
    %699 = vmatpush.msra.mxu0 %v334
    %700 = vmatmul.f32.gmra.mxu0 %v682
    %v701 = vpop.f32.mrf.mxu0
    %v702 = vadd.f32 %v346, %v701
    %703 = vdwg.mxu0
    %v705 = vrot.slane %v702, 4
    %v707 = vadd.f32 %v678, %v705
    %v708 = vxor.u32 %v707, 2147483648
    %v709 = vmul.f32 %v708, 1.442695
    %v710 = vpow.pop %v709
    %v711 = vadd.f32 %v710, 1.0
    %v712 = vrcp.pop %v711
    %v713 = vmul.f32 %v711, %v712
    %v714 = vsub.f32 1.0, %v713
    %v715 = vmul.f32 %v712, %v714
    %v716 = vadd.f32 %v712, %v715
    %vm717 = vweird.f32 %v711
    %vm718 = vweird.f32 %v712
    %vm719 = vmor %vm717, %vm718
    %v720 = vsel %vm719, %v712, %v716
    %v721 = vand.u32 2147483647, %v711
    %vm722 = vcmp.eq.f32.partialorder %v721, 8.507059e+37
    %v723 = vand.u32 %v711, 2147483648
    %v724 = vor.u32 1.1754944e-38, %v723
    %v725 = vsel %vm722, %v724, %v720
    %v726 = vmul.f32 1.0, %v725
    %727 = vrot.lane.b32.xlu0 %v705, 64
    %v728 = vpop.permute.xlu0 %727
    %v730 = vmul.f32 %v726, %v728
    %732 = vrot.lane.b32.xlu0 %v730, 64
    %v733 = vpop.permute.xlu0 %732
    %v735 = vadd.f32 %v678, %v733
    %v736 = vtanh.pop %v735
    %v737 = vsub.f32 1.0, %v726
    %739 = vrot.lane.b32.xlu0 %v736, 96
    %v740 = vpop.permute.xlu0 %739
    %v742 = vmul.f32 %v737, %v740
    %v743 = vrot.slane %v575, 6
    %v745 = vmul.f32 %v726, %v743
    %v746 = vadd.f32 %v742, %v745
    %v747 = vld [vmem:[#allocation2 + $0x10] sm:$0xc]
    %v748 = vld [vmem:[#allocation2 + $0x18] sm:$0xc]
    %v749 = vrot.slane %v665, 4
    %v750 = vsel %vm111, %v749, 0
    %752 = vmatpush.msra.mxu0 0.0
    %753 = vmatpush.msra.mxu0 0.0
    %754 = vmatpush.msra.mxu0 0.0
    %755 = vmatpush.msra.mxu0 0.0
    %756 = vmatpush.msra.mxu0 0.0
    %757 = vmatpush.msra.mxu0 0.0
    %758 = vmatpush.msra.mxu0 0.0
    %759 = vmatpush.msra.mxu0 0.0
    %760 = vmatpush.msra.mxu0 0.0
    %761 = vmatpush.msra.mxu0 0.0
    %762 = vmatpush.msra.mxu0 0.0
    %763 = vmatpush.msra.mxu0 0.0
    %764 = vmatpush.msra.mxu0 %v341
    %765 = vmatpush.msra.mxu0 %v340
    %766 = vmatpush.msra.mxu0 %v339
    %767 = vmatpush.msra.mxu0 %v338
    %768 = vmatmul.f32.gmra.mxu0 %v750
    %v769 = vpop.f32.mrf.mxu0
    %v770 = vadd.f32 %v413, %v769
    %771 = vdwg.mxu0
    %v773 = vrot.slane %v770, 6
    %774 = vrot.lane.b32.xlu0 %v773, 96
    %v775 = vpop.permute.xlu0 %774
    %v777 = vadd.f32 %v747, %v775
    %v778 = vxor.u32 %v777, 2147483648
    %v779 = vmul.f32 %v778, 1.442695
    %v780 = vpow.pop %v779
    %v781 = vadd.f32 %v780, 1.0
    %v782 = vrcp.pop %v781
    %v783 = vmul.f32 %v781, %v782
    %v784 = vsub.f32 1.0, %v783
    %v785 = vmul.f32 %v782, %v784
    %v786 = vadd.f32 %v782, %v785
    %vm787 = vweird.f32 %v781
    %vm788 = vweird.f32 %v782
    %vm789 = vmor %vm787, %vm788
    %v790 = vsel %vm789, %v782, %v786
    %v791 = vand.u32 2147483647, %v781
    %vm792 = vcmp.eq.f32.partialorder %v791, 8.507059e+37
    %v793 = vand.u32 %v781, 2147483648
    %v794 = vor.u32 1.1754944e-38, %v793
    %v795 = vsel %vm792, %v794, %v790
    %v796 = vmul.f32 1.0, %v795
    %v797 = vadd.f32 %v748, %v775
    %v798 = vxor.u32 %v797, 2147483648
    %v799 = vmul.f32 %v798, 1.442695
    %v800 = vpow.pop %v799
    %v801 = vadd.f32 %v800, 1.0
    %v802 = vrcp.pop %v801
    %v803 = vmul.f32 %v801, %v802
    %v804 = vsub.f32 1.0, %v803
    %v805 = vmul.f32 %v802, %v804
    %v806 = vadd.f32 %v802, %v805
    %vm807 = vweird.f32 %v801
    %vm808 = vweird.f32 %v802
    %vm809 = vmor %vm807, %vm808
    %v810 = vsel %vm809, %v802, %v806
    %v811 = vand.u32 2147483647, %v801
    %vm812 = vcmp.eq.f32.partialorder %v811, 8.507059e+37
    %v813 = vand.u32 %v801, 2147483648
    %v814 = vor.u32 1.1754944e-38, %v813
    %v815 = vsel %vm812, %v814, %v810
    %v816 = vmul.f32 1.0, %v815
    %817 = vrot.lane.b32.xlu0 %v773, 32
    %v818 = vpop.permute.xlu0 %817
    %v820 = vmul.f32 %v796, %v818
    %822 = vrot.lane.b32.xlu0 %v820, 64
    %v823 = vpop.permute.xlu0 %822
    %v825 = vadd.f32 %v748, %v823
    %v826 = vtanh.pop %v825
    %v827 = vsub.f32 1.0, %v816
    %829 = vrot.lane.b32.xlu0 %v826, 96
    %v830 = vpop.permute.xlu0 %829
    %v832 = vmul.f32 %v827, %v830
    %v833 = vrot.slane %v665, 2
    %v835 = vmul.f32 %v816, %v833
    %v836 = vadd.f32 %v832, %v835
    %838 = vrot.lane.b32.xlu0 %v746, 96
    %v839 = vpop.permute.xlu0 %838
    %vm841 = vcmask 259076
    %842 = vst.msk [vmem:[#allocation12] sm:$0x30] %vm841, %v839
    %844 = vrot.lane.b32.xlu0 %v836, 32
    %v845 = vpop.permute.xlu0 %844
    %vm847 = vcmask 519426
    %848 = vst.msk [vmem:[#allocation12 + $0x8] sm:$0xc] %vm847, %v845
    %v849 = vld [vmem:[#allocation2] sm:$0xc0]
    %v850 = vrot.slane %v746, 4
    %851 = vrot.lane.b32.xlu0 %v850, 96
    %v852 = vpop.permute.xlu0 %851
    %v853 = vsel %vm111, %v852, 0
    %855 = vmatpush.msra.mxu0 0.0
    %856 = vmatpush.msra.mxu0 0.0
    %857 = vmatpush.msra.mxu0 0.0
    %858 = vmatpush.msra.mxu0 0.0
    %859 = vmatpush.msra.mxu0 0.0
    %860 = vmatpush.msra.mxu0 0.0
    %861 = vmatpush.msra.mxu0 0.0
    %862 = vmatpush.msra.mxu0 0.0
    %863 = vmatpush.msra.mxu0 0.0
    %864 = vmatpush.msra.mxu0 0.0
    %865 = vmatpush.msra.mxu0 0.0
    %866 = vmatpush.msra.mxu0 0.0
    %867 = vmatpush.msra.mxu0 %v337
    %868 = vmatpush.msra.mxu0 %v336
    %869 = vmatpush.msra.mxu0 %v335
    %870 = vmatpush.msra.mxu0 %v334
    %871 = vmatmul.f32.gmra.mxu0 %v853
    %v872 = vpop.f32.mrf.mxu0
    %v873 = vadd.f32 %v346, %v872
    %874 = vdwg.mxu0
    %v876 = vrot.slane %v873, 2
    %v878 = vadd.f32 %v849, %v876
    %v879 = vxor.u32 %v878, 2147483648
    %v880 = vmul.f32 %v879, 1.442695
    %v881 = vpow.pop %v880
    %v882 = vadd.f32 %v881, 1.0
    %v883 = vrcp.pop %v882
    %v884 = vmul.f32 %v882, %v883
    %v885 = vsub.f32 1.0, %v884
    %v886 = vmul.f32 %v883, %v885
    %v887 = vadd.f32 %v883, %v886
    %vm888 = vweird.f32 %v882
    %vm889 = vweird.f32 %v883
    %vm890 = vmor %vm888, %vm889
    %v891 = vsel %vm890, %v883, %v887
    %v892 = vand.u32 2147483647, %v882
    %vm893 = vcmp.eq.f32.partialorder %v892, 8.507059e+37
    %v894 = vand.u32 %v882, 2147483648
    %v895 = vor.u32 1.1754944e-38, %v894
    %v896 = vsel %vm893, %v895, %v891
    %v897 = vmul.f32 1.0, %v896
    %898 = vrot.lane.b32.xlu0 %v876, 64
    %v899 = vpop.permute.xlu0 %898
    %v901 = vmul.f32 %v897, %v899
    %903 = vrot.lane.b32.xlu0 %v901, 64
    %v904 = vpop.permute.xlu0 %903
    %v906 = vadd.f32 %v849, %v904
    %v907 = vtanh.pop %v906
    %v908 = vsub.f32 1.0, %v897
    %910 = vrot.lane.b32.xlu0 %v907, 96
    %v911 = vpop.permute.xlu0 %910
    %v913 = vmul.f32 %v908, %v911
    %v914 = vrot.slane %v746, 6
    %v916 = vmul.f32 %v897, %v914
    %v917 = vadd.f32 %v913, %v916
    %v918 = vld [vmem:[#allocation2 + $0x10] sm:$0x3]
    %v919 = vld [vmem:[#allocation2 + $0x18] sm:$0x3]
    %v920 = vrot.slane %v836, 2
    %v921 = vsel %vm111, %v920, 0
    %923 = vmatpush.msra.mxu0 0.0
    %924 = vmatpush.msra.mxu0 0.0
    %925 = vmatpush.msra.mxu0 0.0
    %926 = vmatpush.msra.mxu0 0.0
    %927 = vmatpush.msra.mxu0 0.0
    %928 = vmatpush.msra.mxu0 0.0
    %929 = vmatpush.msra.mxu0 0.0
    %930 = vmatpush.msra.mxu0 0.0
    %931 = vmatpush.msra.mxu0 0.0
    %932 = vmatpush.msra.mxu0 0.0
    %933 = vmatpush.msra.mxu0 0.0
    %934 = vmatpush.msra.mxu0 0.0
    %935 = vmatpush.msra.mxu0 %v341
    %936 = vmatpush.msra.mxu0 %v340
    %937 = vmatpush.msra.mxu0 %v339
    %938 = vmatpush.msra.mxu0 %v338
    %939 = vmatmul.f32.gmra.mxu0 %v921
    %v940 = vpop.f32.mrf.mxu0
    %v941 = vadd.f32 %v413, %v940
    %942 = vdwg.mxu0
    %944 = vrot.lane.b32.xlu0 %v941, 96
    %v945 = vpop.permute.xlu0 %944
    %v947 = vadd.f32 %v918, %v945
    %v948 = vxor.u32 %v947, 2147483648
    %v949 = vmul.f32 %v948, 1.442695
    %v950 = vpow.pop %v949
    %v951 = vadd.f32 %v950, 1.0
    %v952 = vrcp.pop %v951
    %v953 = vmul.f32 %v951, %v952
    %v954 = vsub.f32 1.0, %v953
    %v955 = vmul.f32 %v952, %v954
    %v956 = vadd.f32 %v952, %v955
    %vm957 = vweird.f32 %v951
    %vm958 = vweird.f32 %v952
    %vm959 = vmor %vm957, %vm958
    %v960 = vsel %vm959, %v952, %v956
    %v961 = vand.u32 2147483647, %v951
    %vm962 = vcmp.eq.f32.partialorder %v961, 8.507059e+37
    %v963 = vand.u32 %v951, 2147483648
    %v964 = vor.u32 1.1754944e-38, %v963
    %v965 = vsel %vm962, %v964, %v960
    %v966 = vmul.f32 1.0, %v965
    %v967 = vadd.f32 %v919, %v945
    %v968 = vxor.u32 %v967, 2147483648
    %v969 = vmul.f32 %v968, 1.442695
    %v970 = vpow.pop %v969
    %v971 = vadd.f32 %v970, 1.0
    %v972 = vrcp.pop %v971
    %v973 = vmul.f32 %v971, %v972
    %v974 = vsub.f32 1.0, %v973
    %v975 = vmul.f32 %v972, %v974
    %v976 = vadd.f32 %v972, %v975
    %vm977 = vweird.f32 %v971
    %vm978 = vweird.f32 %v972
    %vm979 = vmor %vm977, %vm978
    %v980 = vsel %vm979, %v972, %v976
    %v981 = vand.u32 2147483647, %v971
    %vm982 = vcmp.eq.f32.partialorder %v981, 8.507059e+37
    %v983 = vand.u32 %v971, 2147483648
    %v984 = vor.u32 1.1754944e-38, %v983
    %v985 = vsel %vm982, %v984, %v980
    %v986 = vmul.f32 1.0, %v985
    %987 = vrot.lane.b32.xlu0 %v941, 32
    %v988 = vpop.permute.xlu0 %987
    %v990 = vmul.f32 %v966, %v988
    %992 = vrot.lane.b32.xlu0 %v990, 64
    %v993 = vpop.permute.xlu0 %992
    %v995 = vadd.f32 %v919, %v993
    %v996 = vtanh.pop %v995
    %v997 = vsub.f32 1.0, %v986
    %999 = vrot.lane.b32.xlu0 %v996, 96
    %v1000 = vpop.permute.xlu0 %999
    %v1002 = vmul.f32 %v997, %v1000
    %v1004 = vmul.f32 %v986, %v920
    %v1005 = vadd.f32 %v1002, %v1004
    %1007 = vrot.lane.b32.xlu0 %v917, 96
    %v1008 = vpop.permute.xlu0 %1007
    %vm1010 = vcmask 261126
    %1011 = vst.msk [vmem:[#allocation12] sm:$0xc0] %vm1010, %v1008
    %1013 = vrot.lane.b32.xlu0 %v1005, 32
    %v1014 = vpop.permute.xlu0 %1013
    %vm1016 = vcmask 517376
    %1017 = vst.msk [vmem:[#allocation12 + $0x8] sm:$0x3] %vm1016, %v1014
    %v1018 = vld [vmem:[#allocation2 + $0x10] sm:$0x3]
    %v1019 = vrot.slane %v917, 6
    %1020 = vrot.lane.b32.xlu0 %v1019, 96
    %v1021 = vpop.permute.xlu0 %1020
    %v1022 = vsel %vm111, %v1021, 0
    %1024 = vmatpush.msra.mxu0 0.0
    %1025 = vmatpush.msra.mxu0 0.0
    %1026 = vmatpush.msra.mxu0 0.0
    %1027 = vmatpush.msra.mxu0 0.0
    %1028 = vmatpush.msra.mxu0 0.0
    %1029 = vmatpush.msra.mxu0 0.0
    %1030 = vmatpush.msra.mxu0 0.0
    %1031 = vmatpush.msra.mxu0 0.0
    %1032 = vmatpush.msra.mxu0 0.0
    %1033 = vmatpush.msra.mxu0 0.0
    %1034 = vmatpush.msra.mxu0 0.0
    %1035 = vmatpush.msra.mxu0 0.0
    %1036 = vmatpush.msra.mxu0 %v337
    %1037 = vmatpush.msra.mxu0 %v336
    %1038 = vmatpush.msra.mxu0 %v335
    %1039 = vmatpush.msra.mxu0 %v334
    %1040 = vmatmul.f32.gmra.mxu0 %v1022
    %v1041 = vpop.f32.mrf.mxu0
    %v1042 = vadd.f32 %v346, %v1041
    %1043 = vdwg.mxu0
    %v1044 = vadd.f32 %v1018, %v1042
    %v1045 = vxor.u32 %v1044, 2147483648
    %v1046 = vmul.f32 %v1045, 1.442695
    %v1047 = vpow.pop %v1046
    %v1048 = vadd.f32 %v1047, 1.0
    %v1049 = vrcp.pop %v1048
    %v1050 = vmul.f32 %v1048, %v1049
    %v1051 = vsub.f32 1.0, %v1050
    %v1052 = vmul.f32 %v1049, %v1051
    %v1053 = vadd.f32 %v1049, %v1052
    %vm1054 = vweird.f32 %v1048
    %vm1055 = vweird.f32 %v1049
    %vm1056 = vmor %vm1054, %vm1055
    %v1057 = vsel %vm1056, %v1049, %v1053
    %v1058 = vand.u32 2147483647, %v1048
    %vm1059 = vcmp.eq.f32.partialorder %v1058, 8.507059e+37
    %v1060 = vand.u32 %v1048, 2147483648
    %v1061 = vor.u32 1.1754944e-38, %v1060
    %v1062 = vsel %vm1059, %v1061, %v1057
    %v1063 = vmul.f32 1.0, %v1062
    %1065 = vrot.lane.b32.xlu0 %v1042, 64
    %v1066 = vpop.permute.xlu0 %1065
    %v1068 = vmul.f32 %v1063, %v1066
    %1070 = vrot.lane.b32.xlu0 %v1068, 64
    %v1071 = vpop.permute.xlu0 %1070
    %v1073 = vadd.f32 %v1018, %v1071
    %v1074 = vtanh.pop %v1073
    %v1075 = vsub.f32 1.0, %v1063
    %1077 = vrot.lane.b32.xlu0 %v1074, 96
    %v1078 = vpop.permute.xlu0 %1077
    %v1080 = vmul.f32 %v1075, %v1078
    %v1082 = vmul.f32 %v1063, %v1019
    %v1083 = vadd.f32 %v1080, %v1082
    %v1084 = vld [vmem:[#allocation2] sm:$0xc0]
    %v1085 = vld [vmem:[#allocation2 + $0x8] sm:$0xc0]
    %v1086 = vsel %vm111, %v1005, 0
    %1088 = vmatpush.msra.mxu0 0.0
    %1089 = vmatpush.msra.mxu0 0.0
    %1090 = vmatpush.msra.mxu0 0.0
    %1091 = vmatpush.msra.mxu0 0.0
    %1092 = vmatpush.msra.mxu0 0.0
    %1093 = vmatpush.msra.mxu0 0.0
    %1094 = vmatpush.msra.mxu0 0.0
    %1095 = vmatpush.msra.mxu0 0.0
    %1096 = vmatpush.msra.mxu0 0.0
    %1097 = vmatpush.msra.mxu0 0.0
    %1098 = vmatpush.msra.mxu0 0.0
    %1099 = vmatpush.msra.mxu0 0.0
    %1100 = vmatpush.msra.mxu0 %v341
    %1101 = vmatpush.msra.mxu0 %v340
    %1102 = vmatpush.msra.mxu0 %v339
    %1103 = vmatpush.msra.mxu0 %v338
    %1104 = vmatmul.f32.gmra.mxu0 %v1086
    %v1105 = vpop.f32.mrf.mxu0
    %v1106 = vadd.f32 %v413, %v1105
    %1107 = vdwg.mxu0
    %v1109 = vrot.slane %v1106, 2
    %1110 = vrot.lane.b32.xlu0 %v1109, 96
    %v1111 = vpop.permute.xlu0 %1110
    %v1113 = vadd.f32 %v1084, %v1111
    %v1114 = vxor.u32 %v1113, 2147483648
    %v1115 = vmul.f32 %v1114, 1.442695
    %v1116 = vpow.pop %v1115
    %v1117 = vadd.f32 %v1116, 1.0
    %v1118 = vrcp.pop %v1117
    %v1119 = vmul.f32 %v1117, %v1118
    %v1120 = vsub.f32 1.0, %v1119
    %v1121 = vmul.f32 %v1118, %v1120
    %v1122 = vadd.f32 %v1118, %v1121
    %vm1123 = vweird.f32 %v1117
    %vm1124 = vweird.f32 %v1118
    %vm1125 = vmor %vm1123, %vm1124
    %v1126 = vsel %vm1125, %v1118, %v1122
    %v1127 = vand.u32 2147483647, %v1117
    %vm1128 = vcmp.eq.f32.partialorder %v1127, 8.507059e+37
    %v1129 = vand.u32 %v1117, 2147483648
    %v1130 = vor.u32 1.1754944e-38, %v1129
    %v1131 = vsel %vm1128, %v1130, %v1126
    %v1132 = vmul.f32 1.0, %v1131
    %v1133 = vadd.f32 %v1085, %v1111
    %v1134 = vxor.u32 %v1133, 2147483648
    %v1135 = vmul.f32 %v1134, 1.442695
    %v1136 = vpow.pop %v1135
    %v1137 = vadd.f32 %v1136, 1.0
    %v1138 = vrcp.pop %v1137
    %v1139 = vmul.f32 %v1137, %v1138
    %v1140 = vsub.f32 1.0, %v1139
    %v1141 = vmul.f32 %v1138, %v1140
    %v1142 = vadd.f32 %v1138, %v1141
    %vm1143 = vweird.f32 %v1137
    %vm1144 = vweird.f32 %v1138
    %vm1145 = vmor %vm1143, %vm1144
    %v1146 = vsel %vm1145, %v1138, %v1142
    %v1147 = vand.u32 2147483647, %v1137
    %vm1148 = vcmp.eq.f32.partialorder %v1147, 8.507059e+37
    %v1149 = vand.u32 %v1137, 2147483648
    %v1150 = vor.u32 1.1754944e-38, %v1149
    %v1151 = vsel %vm1148, %v1150, %v1146
    %v1152 = vmul.f32 1.0, %v1151
    %1153 = vrot.lane.b32.xlu0 %v1109, 32
    %v1154 = vpop.permute.xlu0 %1153
    %v1156 = vmul.f32 %v1132, %v1154
    %1158 = vrot.lane.b32.xlu0 %v1156, 64
    %v1159 = vpop.permute.xlu0 %1158
    %v1161 = vadd.f32 %v1085, %v1159
    %v1162 = vtanh.pop %v1161
    %v1163 = vsub.f32 1.0, %v1152
    %1165 = vrot.lane.b32.xlu0 %v1162, 96
    %v1166 = vpop.permute.xlu0 %1165
    %v1168 = vmul.f32 %v1163, %v1166
    %v1169 = vrot.slane %v1005, 2
    %v1171 = vmul.f32 %v1152, %v1169
    %v1172 = vadd.f32 %v1168, %v1171
    %1174 = vrot.lane.b32.xlu0 %v1083, 96
    %v1175 = vpop.permute.xlu0 %1174
    %1177 = vst.msk [vmem:[#allocation12 + $0x8] sm:$0x3] %vm502, %v1175
    %1179 = vrot.lane.b32.xlu0 %v1172, 32
    %v1180 = vpop.permute.xlu0 %1179
    %1182 = vst.msk [vmem:[#allocation12] sm:$0xc0] %vm508, %v1180
    %v1183 = vld [vmem:[#allocation2 + $0x10] sm:$0xc]
    %v1184 = vsel %vm111, %v1175, 0
    %1186 = vmatpush.msra.mxu0 0.0
    %1187 = vmatpush.msra.mxu0 0.0
    %1188 = vmatpush.msra.mxu0 0.0
    %1189 = vmatpush.msra.mxu0 0.0
    %1190 = vmatpush.msra.mxu0 0.0
    %1191 = vmatpush.msra.mxu0 0.0
    %1192 = vmatpush.msra.mxu0 0.0
    %1193 = vmatpush.msra.mxu0 0.0
    %1194 = vmatpush.msra.mxu0 0.0
    %1195 = vmatpush.msra.mxu0 0.0
    %1196 = vmatpush.msra.mxu0 0.0
    %1197 = vmatpush.msra.mxu0 0.0
    %1198 = vmatpush.msra.mxu0 %v337
    %1199 = vmatpush.msra.mxu0 %v336
    %1200 = vmatpush.msra.mxu0 %v335
    %1201 = vmatpush.msra.mxu0 %v334
    %1202 = vmatmul.f32.gmra.mxu0 %v1184
    %v1203 = vpop.f32.mrf.mxu0
    %v1204 = vadd.f32 %v346, %v1203
    %1205 = vdwg.mxu0
    %v1207 = vrot.slane %v1204, 6
    %v1209 = vadd.f32 %v1183, %v1207
    %v1210 = vxor.u32 %v1209, 2147483648
    %v1211 = vmul.f32 %v1210, 1.442695
    %v1212 = vpow.pop %v1211
    %v1213 = vadd.f32 %v1212, 1.0
    %v1214 = vrcp.pop %v1213
    %v1215 = vmul.f32 %v1213, %v1214
    %v1216 = vsub.f32 1.0, %v1215
    %v1217 = vmul.f32 %v1214, %v1216
    %v1218 = vadd.f32 %v1214, %v1217
    %vm1219 = vweird.f32 %v1213
    %vm1220 = vweird.f32 %v1214
    %vm1221 = vmor %vm1219, %vm1220
    %v1222 = vsel %vm1221, %v1214, %v1218
    %v1223 = vand.u32 2147483647, %v1213
    %vm1224 = vcmp.eq.f32.partialorder %v1223, 8.507059e+37
    %v1225 = vand.u32 %v1213, 2147483648
    %v1226 = vor.u32 1.1754944e-38, %v1225
    %v1227 = vsel %vm1224, %v1226, %v1222
    %v1228 = vmul.f32 1.0, %v1227
    %1229 = vrot.lane.b32.xlu0 %v1207, 64
    %v1230 = vpop.permute.xlu0 %1229
    %v1232 = vmul.f32 %v1228, %v1230
    %1234 = vrot.lane.b32.xlu0 %v1232, 64
    %v1235 = vpop.permute.xlu0 %1234
    %v1237 = vadd.f32 %v1183, %v1235
    %v1238 = vtanh.pop %v1237
    %v1239 = vsub.f32 1.0, %v1228
    %1241 = vrot.lane.b32.xlu0 %v1238, 96
    %v1242 = vpop.permute.xlu0 %1241
    %v1244 = vmul.f32 %v1239, %v1242
    %v1245 = vrot.slane %v1083, 6
    %v1247 = vmul.f32 %v1228, %v1245
    %v1248 = vadd.f32 %v1244, %v1247
    %v1249 = vld [vmem:[#allocation2] sm:$0x30]
    %v1250 = vld [vmem:[#allocation2 + $0x8] sm:$0x30]
    %v1251 = vrot.slane %v1172, 6
    %v1252 = vsel %vm111, %v1251, 0
    %1254 = vmatpush.msra.mxu0 0.0
    %1255 = vmatpush.msra.mxu0 0.0
    %1256 = vmatpush.msra.mxu0 0.0
    %1257 = vmatpush.msra.mxu0 0.0
    %1258 = vmatpush.msra.mxu0 0.0
    %1259 = vmatpush.msra.mxu0 0.0
    %1260 = vmatpush.msra.mxu0 0.0
    %1261 = vmatpush.msra.mxu0 0.0
    %1262 = vmatpush.msra.mxu0 0.0
    %1263 = vmatpush.msra.mxu0 0.0
    %1264 = vmatpush.msra.mxu0 0.0
    %1265 = vmatpush.msra.mxu0 0.0
    %1266 = vmatpush.msra.mxu0 %v341
    %1267 = vmatpush.msra.mxu0 %v340
    %1268 = vmatpush.msra.mxu0 %v339
    %1269 = vmatpush.msra.mxu0 %v338
    %1270 = vmatmul.f32.gmra.mxu0 %v1252
    %v1271 = vpop.f32.mrf.mxu0
    %v1272 = vadd.f32 %v413, %v1271
    %1273 = vdwg.mxu0
    %v1275 = vrot.slane %v1272, 4
    %1276 = vrot.lane.b32.xlu0 %v1275, 96
    %v1277 = vpop.permute.xlu0 %1276
    %v1279 = vadd.f32 %v1249, %v1277
    %v1280 = vxor.u32 %v1279, 2147483648
    %v1281 = vmul.f32 %v1280, 1.442695
    %v1282 = vpow.pop %v1281
    %v1283 = vadd.f32 %v1282, 1.0
    %v1284 = vrcp.pop %v1283
    %v1285 = vmul.f32 %v1283, %v1284
    %v1286 = vsub.f32 1.0, %v1285
    %v1287 = vmul.f32 %v1284, %v1286
    %v1288 = vadd.f32 %v1284, %v1287
    %vm1289 = vweird.f32 %v1283
    %vm1290 = vweird.f32 %v1284
    %vm1291 = vmor %vm1289, %vm1290
    %v1292 = vsel %vm1291, %v1284, %v1288
    %v1293 = vand.u32 2147483647, %v1283
    %vm1294 = vcmp.eq.f32.partialorder %v1293, 8.507059e+37
    %v1295 = vand.u32 %v1283, 2147483648
    %v1296 = vor.u32 1.1754944e-38, %v1295
    %v1297 = vsel %vm1294, %v1296, %v1292
    %v1298 = vmul.f32 1.0, %v1297
    %v1299 = vadd.f32 %v1250, %v1277
    %v1300 = vxor.u32 %v1299, 2147483648
    %v1301 = vmul.f32 %v1300, 1.442695
    %v1302 = vpow.pop %v1301
    %v1303 = vadd.f32 %v1302, 1.0
    %v1304 = vrcp.pop %v1303
    %v1305 = vmul.f32 %v1303, %v1304
    %v1306 = vsub.f32 1.0, %v1305
    %v1307 = vmul.f32 %v1304, %v1306
    %v1308 = vadd.f32 %v1304, %v1307
    %vm1309 = vweird.f32 %v1303
    %vm1310 = vweird.f32 %v1304
    %vm1311 = vmor %vm1309, %vm1310
    %v1312 = vsel %vm1311, %v1304, %v1308
    %v1313 = vand.u32 2147483647, %v1303
    %vm1314 = vcmp.eq.f32.partialorder %v1313, 8.507059e+37
    %v1315 = vand.u32 %v1303, 2147483648
    %v1316 = vor.u32 1.1754944e-38, %v1315
    %v1317 = vsel %vm1314, %v1316, %v1312
    %v1318 = vmul.f32 1.0, %v1317
    %1319 = vrot.lane.b32.xlu0 %v1275, 32
    %v1320 = vpop.permute.xlu0 %1319
    %v1322 = vmul.f32 %v1298, %v1320
    %1324 = vrot.lane.b32.xlu0 %v1322, 64
    %v1325 = vpop.permute.xlu0 %1324
    %v1327 = vadd.f32 %v1250, %v1325
    %v1328 = vtanh.pop %v1327
    %v1329 = vsub.f32 1.0, %v1318
    %1331 = vrot.lane.b32.xlu0 %v1328, 96
    %v1332 = vpop.permute.xlu0 %1331
    %v1334 = vmul.f32 %v1329, %v1332
    %v1335 = vrot.slane %v1172, 2
    %v1337 = vmul.f32 %v1318, %v1335
    %v1338 = vadd.f32 %v1334, %v1337
    %1340 = vrot.lane.b32.xlu0 %v1248, 96
    %v1341 = vpop.permute.xlu0 %1340
    %1343 = vst.msk [vmem:[#allocation12 + $0x8] sm:$0xc] %vm670, %v1341
    %1345 = vrot.lane.b32.xlu0 %v1338, 32
    %v1346 = vpop.permute.xlu0 %1345
    %1348 = vst.msk [vmem:[#allocation12] sm:$0x30] %vm676, %v1346
    %v1349 = vld [vmem:[#allocation2 + $0x10] sm:$0x30]
    %v1350 = vrot.slane %v1248, 2
    %1351 = vrot.lane.b32.xlu0 %v1350, 96
    %v1352 = vpop.permute.xlu0 %1351
    %v1353 = vsel %vm111, %v1352, 0
    %1355 = vmatpush.msra.mxu0 0.0
    %1356 = vmatpush.msra.mxu0 0.0
    %1357 = vmatpush.msra.mxu0 0.0
    %1358 = vmatpush.msra.mxu0 0.0
    %1359 = vmatpush.msra.mxu0 0.0
    %1360 = vmatpush.msra.mxu0 0.0
    %1361 = vmatpush.msra.mxu0 0.0
    %1362 = vmatpush.msra.mxu0 0.0
    %1363 = vmatpush.msra.mxu0 0.0
    %1364 = vmatpush.msra.mxu0 0.0
    %1365 = vmatpush.msra.mxu0 0.0
    %1366 = vmatpush.msra.mxu0 0.0
    %1367 = vmatpush.msra.mxu0 %v337
    %1368 = vmatpush.msra.mxu0 %v336
    %1369 = vmatpush.msra.mxu0 %v335
    %1370 = vmatpush.msra.mxu0 %v334
    %1371 = vmatmul.f32.gmra.mxu0 %v1353
    %v1372 = vpop.f32.mrf.mxu0
    %v1373 = vadd.f32 %v346, %v1372
    %1374 = vdwg.mxu0
    %v1376 = vrot.slane %v1373, 4
    %v1378 = vadd.f32 %v1349, %v1376
    %v1379 = vxor.u32 %v1378, 2147483648
    %v1380 = vmul.f32 %v1379, 1.442695
    %v1381 = vpow.pop %v1380
    %v1382 = vadd.f32 %v1381, 1.0
    %v1383 = vrcp.pop %v1382
    %v1384 = vmul.f32 %v1382, %v1383
    %v1385 = vsub.f32 1.0, %v1384
    %v1386 = vmul.f32 %v1383, %v1385
    %v1387 = vadd.f32 %v1383, %v1386
    %vm1388 = vweird.f32 %v1382
    %vm1389 = vweird.f32 %v1383
    %vm1390 = vmor %vm1388, %vm1389
    %v1391 = vsel %vm1390, %v1383, %v1387
    %v1392 = vand.u32 2147483647, %v1382
    %vm1393 = vcmp.eq.f32.partialorder %v1392, 8.507059e+37
    %v1394 = vand.u32 %v1382, 2147483648
    %v1395 = vor.u32 1.1754944e-38, %v1394
    %v1396 = vsel %vm1393, %v1395, %v1391
    %v1397 = vmul.f32 1.0, %v1396
    %1398 = vrot.lane.b32.xlu0 %v1376, 64
    %v1399 = vpop.permute.xlu0 %1398
    %v1401 = vmul.f32 %v1397, %v1399
    %1403 = vrot.lane.b32.xlu0 %v1401, 64
    %v1404 = vpop.permute.xlu0 %1403
    %v1406 = vadd.f32 %v1349, %v1404
    %v1407 = vtanh.pop %v1406
    %v1408 = vsub.f32 1.0, %v1397
    %1410 = vrot.lane.b32.xlu0 %v1407, 96
    %v1411 = vpop.permute.xlu0 %1410
    %v1413 = vmul.f32 %v1408, %v1411
    %v1414 = vrot.slane %v1248, 6
    %v1416 = vmul.f32 %v1397, %v1414
    %v1417 = vadd.f32 %v1413, %v1416
    %v1418 = vld [vmem:[#allocation2] sm:$0xc]
    %v1419 = vld [vmem:[#allocation2 + $0x8] sm:$0xc]
    %v1420 = vrot.slane %v1338, 4
    %v1421 = vsel %vm111, %v1420, 0
    %1423 = vmatpush.msra.mxu0 0.0
    %1424 = vmatpush.msra.mxu0 0.0
    %1425 = vmatpush.msra.mxu0 0.0
    %1426 = vmatpush.msra.mxu0 0.0
    %1427 = vmatpush.msra.mxu0 0.0
    %1428 = vmatpush.msra.mxu0 0.0
    %1429 = vmatpush.msra.mxu0 0.0
    %1430 = vmatpush.msra.mxu0 0.0
    %1431 = vmatpush.msra.mxu0 0.0
    %1432 = vmatpush.msra.mxu0 0.0
    %1433 = vmatpush.msra.mxu0 0.0
    %1434 = vmatpush.msra.mxu0 0.0
    %1435 = vmatpush.msra.mxu0 %v341
    %1436 = vmatpush.msra.mxu0 %v340
    %1437 = vmatpush.msra.mxu0 %v339
    %1438 = vmatpush.msra.mxu0 %v338
    %1439 = vmatmul.f32.gmra.mxu0 %v1421
    %v1440 = vpop.f32.mrf.mxu0
    %v1441 = vadd.f32 %v413, %v1440
    %1442 = vdwg.mxu0
    %v1444 = vrot.slane %v1441, 6
    %1445 = vrot.lane.b32.xlu0 %v1444, 96
    %v1446 = vpop.permute.xlu0 %1445
    %v1448 = vadd.f32 %v1418, %v1446
    %v1449 = vxor.u32 %v1448, 2147483648
    %v1450 = vmul.f32 %v1449, 1.442695
    %v1451 = vpow.pop %v1450
    %v1452 = vadd.f32 %v1451, 1.0
    %v1453 = vrcp.pop %v1452
    %v1454 = vmul.f32 %v1452, %v1453
    %v1455 = vsub.f32 1.0, %v1454
    %v1456 = vmul.f32 %v1453, %v1455
    %v1457 = vadd.f32 %v1453, %v1456
    %vm1458 = vweird.f32 %v1452
    %vm1459 = vweird.f32 %v1453
    %vm1460 = vmor %vm1458, %vm1459
    %v1461 = vsel %vm1460, %v1453, %v1457
    %v1462 = vand.u32 2147483647, %v1452
    %vm1463 = vcmp.eq.f32.partialorder %v1462, 8.507059e+37
    %v1464 = vand.u32 %v1452, 2147483648
    %v1465 = vor.u32 1.1754944e-38, %v1464
    %v1466 = vsel %vm1463, %v1465, %v1461
    %v1467 = vmul.f32 1.0, %v1466
    %v1468 = vadd.f32 %v1419, %v1446
    %v1469 = vxor.u32 %v1468, 2147483648
    %v1470 = vmul.f32 %v1469, 1.442695
    %v1471 = vpow.pop %v1470
    %v1472 = vadd.f32 %v1471, 1.0
    %v1473 = vrcp.pop %v1472
    %v1474 = vmul.f32 %v1472, %v1473
    %v1475 = vsub.f32 1.0, %v1474
    %v1476 = vmul.f32 %v1473, %v1475
    %v1477 = vadd.f32 %v1473, %v1476
    %vm1478 = vweird.f32 %v1472
    %vm1479 = vweird.f32 %v1473
    %vm1480 = vmor %vm1478, %vm1479
    %v1481 = vsel %vm1480, %v1473, %v1477
    %v1482 = vand.u32 2147483647, %v1472
    %vm1483 = vcmp.eq.f32.partialorder %v1482, 8.507059e+37
    %v1484 = vand.u32 %v1472, 2147483648
    %v1485 = vor.u32 1.1754944e-38, %v1484
    %v1486 = vsel %vm1483, %v1485, %v1481
    %v1487 = vmul.f32 1.0, %v1486
    %1488 = vrot.lane.b32.xlu0 %v1444, 32
    %v1489 = vpop.permute.xlu0 %1488
    %v1491 = vmul.f32 %v1467, %v1489
    %1493 = vrot.lane.b32.xlu0 %v1491, 64
    %v1494 = vpop.permute.xlu0 %1493
    %v1496 = vadd.f32 %v1419, %v1494
    %v1497 = vtanh.pop %v1496
    %v1498 = vsub.f32 1.0, %v1487
    %1500 = vrot.lane.b32.xlu0 %v1497, 96
    %v1501 = vpop.permute.xlu0 %1500
    %v1503 = vmul.f32 %v1498, %v1501
    %v1504 = vrot.slane %v1338, 2
    %v1506 = vmul.f32 %v1487, %v1504
    %v1507 = vadd.f32 %v1503, %v1506
    %1509 = vrot.lane.b32.xlu0 %v1417, 96
    %v1510 = vpop.permute.xlu0 %1509
    %1512 = vst.msk [vmem:[#allocation12 + $0x8] sm:$0x30] %vm841, %v1510
    %1514 = vrot.lane.b32.xlu0 %v1507, 32
    %v1515 = vpop.permute.xlu0 %1514
    %1517 = vst.msk [vmem:[#allocation12] sm:$0xc] %vm847, %v1515
    %v1518 = vld [vmem:[#allocation2 + $0x10] sm:$0xc0]
    %v1519 = vrot.slane %v1417, 4
    %1520 = vrot.lane.b32.xlu0 %v1519, 96
    %v1521 = vpop.permute.xlu0 %1520
    %v1522 = vsel %vm111, %v1521, 0
    %1524 = vmatpush.msra.mxu0 0.0
    %1525 = vmatpush.msra.mxu0 0.0
    %1526 = vmatpush.msra.mxu0 0.0
    %1527 = vmatpush.msra.mxu0 0.0
    %1528 = vmatpush.msra.mxu0 0.0
    %1529 = vmatpush.msra.mxu0 0.0
    %1530 = vmatpush.msra.mxu0 0.0
    %1531 = vmatpush.msra.mxu0 0.0
    %1532 = vmatpush.msra.mxu0 0.0
    %1533 = vmatpush.msra.mxu0 0.0
    %1534 = vmatpush.msra.mxu0 0.0
    %1535 = vmatpush.msra.mxu0 0.0
    %1536 = vmatpush.msra.mxu0 %v337
    %1537 = vmatpush.msra.mxu0 %v336
    %1538 = vmatpush.msra.mxu0 %v335
    %1539 = vmatpush.msra.mxu0 %v334
    %1540 = vmatmul.f32.gmra.mxu0 %v1522
    %v1541 = vpop.f32.mrf.mxu0
    %v1542 = vadd.f32 %v346, %v1541
    %1543 = vdwg.mxu0
    %v1545 = vrot.slane %v1542, 2
    %v1547 = vadd.f32 %v1518, %v1545
    %v1548 = vxor.u32 %v1547, 2147483648
    %v1549 = vmul.f32 %v1548, 1.442695
    %v1550 = vpow.pop %v1549
    %v1551 = vadd.f32 %v1550, 1.0
    %v1552 = vrcp.pop %v1551
    %v1553 = vmul.f32 %v1551, %v1552
    %v1554 = vsub.f32 1.0, %v1553
    %v1555 = vmul.f32 %v1552, %v1554
    %v1556 = vadd.f32 %v1552, %v1555
    %vm1557 = vweird.f32 %v1551
    %vm1558 = vweird.f32 %v1552
    %vm1559 = vmor %vm1557, %vm1558
    %v1560 = vsel %vm1559, %v1552, %v1556
    %v1561 = vand.u32 2147483647, %v1551
    %vm1562 = vcmp.eq.f32.partialorder %v1561, 8.507059e+37
    %v1563 = vand.u32 %v1551, 2147483648
    %v1564 = vor.u32 1.1754944e-38, %v1563
    %v1565 = vsel %vm1562, %v1564, %v1560
    %v1566 = vmul.f32 1.0, %v1565
    %1567 = vrot.lane.b32.xlu0 %v1545, 64
    %v1568 = vpop.permute.xlu0 %1567
    %v1570 = vmul.f32 %v1566, %v1568
    %1572 = vrot.lane.b32.xlu0 %v1570, 64
    %v1573 = vpop.permute.xlu0 %1572
    %v1575 = vadd.f32 %v1518, %v1573
    %v1576 = vtanh.pop %v1575
    %v1577 = vsub.f32 1.0, %v1566
    %1579 = vrot.lane.b32.xlu0 %v1576, 96
    %v1580 = vpop.permute.xlu0 %1579
    %v1582 = vmul.f32 %v1577, %v1580
    %v1583 = vrot.slane %v1417, 6
    %v1585 = vmul.f32 %v1566, %v1583
    %v1586 = vadd.f32 %v1582, %v1585
    %v1587 = vld [vmem:[#allocation2] sm:$0x3]
    %v1588 = vld [vmem:[#allocation2 + $0x8] sm:$0x3]
    %v1589 = vrot.slane %v1507, 2
    %v1590 = vsel %vm111, %v1589, 0
    %1592 = vmatpush.msra.mxu0 0.0
    %1593 = vmatpush.msra.mxu0 0.0
    %1594 = vmatpush.msra.mxu0 0.0
    %1595 = vmatpush.msra.mxu0 0.0
    %1596 = vmatpush.msra.mxu0 0.0
    %1597 = vmatpush.msra.mxu0 0.0
    %1598 = vmatpush.msra.mxu0 0.0
    %1599 = vmatpush.msra.mxu0 0.0
    %1600 = vmatpush.msra.mxu0 0.0
    %1601 = vmatpush.msra.mxu0 0.0
    %1602 = vmatpush.msra.mxu0 0.0
    %1603 = vmatpush.msra.mxu0 0.0
    %1604 = vmatpush.msra.mxu0 %v341
    %1605 = vmatpush.msra.mxu0 %v340
    %1606 = vmatpush.msra.mxu0 %v339
    %1607 = vmatpush.msra.mxu0 %v338
    %1608 = vmatmul.f32.gmra.mxu0 %v1590
    %v1609 = vpop.f32.mrf.mxu0
    %v1610 = vadd.f32 %v413, %v1609
    %1611 = vdwg.mxu0
    %1613 = vrot.lane.b32.xlu0 %v1610, 96
    %v1614 = vpop.permute.xlu0 %1613
    %v1616 = vadd.f32 %v1587, %v1614
    %v1617 = vxor.u32 %v1616, 2147483648
    %v1618 = vmul.f32 %v1617, 1.442695
    %v1619 = vpow.pop %v1618
    %v1620 = vadd.f32 %v1619, 1.0
    %v1621 = vrcp.pop %v1620
    %v1622 = vmul.f32 %v1620, %v1621
    %v1623 = vsub.f32 1.0, %v1622
    %v1624 = vmul.f32 %v1621, %v1623
    %v1625 = vadd.f32 %v1621, %v1624
    %vm1626 = vweird.f32 %v1620
    %vm1627 = vweird.f32 %v1621
    %vm1628 = vmor %vm1626, %vm1627
    %v1629 = vsel %vm1628, %v1621, %v1625
    %v1630 = vand.u32 2147483647, %v1620
    %vm1631 = vcmp.eq.f32.partialorder %v1630, 8.507059e+37
    %v1632 = vand.u32 %v1620, 2147483648
    %v1633 = vor.u32 1.1754944e-38, %v1632
    %v1634 = vsel %vm1631, %v1633, %v1629
    %v1635 = vmul.f32 1.0, %v1634
    %v1636 = vadd.f32 %v1588, %v1614
    %v1637 = vxor.u32 %v1636, 2147483648
    %v1638 = vmul.f32 %v1637, 1.442695
    %v1639 = vpow.pop %v1638
    %v1640 = vadd.f32 %v1639, 1.0
    %v1641 = vrcp.pop %v1640
    %v1642 = vmul.f32 %v1640, %v1641
    %v1643 = vsub.f32 1.0, %v1642
    %v1644 = vmul.f32 %v1641, %v1643
    %v1645 = vadd.f32 %v1641, %v1644
    %vm1646 = vweird.f32 %v1640
    %vm1647 = vweird.f32 %v1641
    %vm1648 = vmor %vm1646, %vm1647
    %v1649 = vsel %vm1648, %v1641, %v1645
    %v1650 = vand.u32 2147483647, %v1640
    %vm1651 = vcmp.eq.f32.partialorder %v1650, 8.507059e+37
    %v1652 = vand.u32 %v1640, 2147483648
    %v1653 = vor.u32 1.1754944e-38, %v1652
    %v1654 = vsel %vm1651, %v1653, %v1649
    %v1655 = vmul.f32 1.0, %v1654
    %1656 = vrot.lane.b32.xlu0 %v1610, 32
    %v1657 = vpop.permute.xlu0 %1656
    %v1659 = vmul.f32 %v1635, %v1657
    %1661 = vrot.lane.b32.xlu0 %v1659, 64
    %v1662 = vpop.permute.xlu0 %1661
    %v1664 = vadd.f32 %v1588, %v1662
    %v1665 = vtanh.pop %v1664
    %v1666 = vsub.f32 1.0, %v1655
    %1668 = vrot.lane.b32.xlu0 %v1665, 96
    %v1669 = vpop.permute.xlu0 %1668
    %v1671 = vmul.f32 %v1666, %v1669
    %v1673 = vmul.f32 %v1655, %v1589
    %v1674 = vadd.f32 %v1671, %v1673
    %1676 = vrot.lane.b32.xlu0 %v1586, 96
    %v1677 = vpop.permute.xlu0 %1676
    %1679 = vst.msk [vmem:[#allocation12 + $0x8] sm:$0xc0] %vm1010, %v1677
    %1681 = vrot.lane.b32.xlu0 %v1674, 32
    %v1682 = vpop.permute.xlu0 %1681
    %1684 = vst.msk [vmem:[#allocation12] sm:$0x3] %vm1016, %v1682
    // Predicated region
    $region58: #{tpu_custom_call.1} parent=1 // pred_check
      _
    $region59: #{tpu_custom_call.1} parent=1 // pred_check_branch
      %1686 = sbr.rel (0) target = $region61
    $region60: #{tpu_custom_call.1} parent=1 // pred_region
      %1688 = vsyncadd [#allocation5], 0
      %s1689 = sshll.u32 [#allocation12], 4
      %s1690 = int_to_ptr.vmem [resolvable:$true] %s1689
      %s1691 = sshll.u32 %s9, 4
      %s1692 = int_to_ptr.hbm [resolvable:$true] %s1691
      %1697 = dma.vmem_to_hbm [thread:$0]  %s1690, 256, %s1692, [#allocation5], 128, 128, 8
    $region61: #{tpu_custom_call.1} parent=1 // pred_fallthru
      _
    // Predicated region
    $region62: #{tpu_custom_call.1} parent=1 // pred_check
      _
    $region63: #{tpu_custom_call.1} parent=1 // pred_check_branch
      %1699 = sbr.rel (0) target = $region65
    $region64: #{tpu_custom_call.1} parent=1 // pred_region
      %1701 = dma.done [#allocation5], 256
    $region65: #{tpu_custom_call.1} parent=1 // pred_fallthru
      _
    %1702 = vsyncpa [#allocation4], 1
    %1703 = vsyncpa [#allocation7], 1
    %1704 = vsyncpa [#allocation10], 1
    %1705 = vsyncpa [#allocation5], 1

</llo_original>
